<compile_context>
chip_gen: v7x
topology: tpu7x:2x2x1
jax: 0.10.0
libtpu: 0.0.40
codegen_flags: <defaults>
</compile_context>

<pallas_src>
import functools

import jax
import jax.numpy as jnp
from jax.experimental import pallas as pl
from jax.experimental.pallas import tpu as pltpu

EPS = 1e-3          # nn.BatchNorm2d(outChannel, eps=0.001)
STAT_ROWS = 8       # stats block: row 0 = column sums, row 1 = column sum-of-squares, rows 2-7 unused


def _round_up(a, b):
    return -(-a // b) * b


def _cdiv(a, b):
    return -(-a // b)


# --------------------------------- weight band (hoistable / cacheable) ---------------------------------
def build_deconv_band(w_deconv, wt):
    """Translation-invariant banded weight matrix for one width tile.

    Rows are (dh, j', ci) with j' in [0, wt], cols are (p, j, q, c) with j in [0, wt):
      y[2i+p, 2(jt*wt+j)+q, c] = sum_{dh,dj,ci} x[i+dh, jt*wt+j+dj, ci] * w[ci, c, p+1-2dh, q+1-2dj]
    (taps with kernel index outside [0,3) are zero; out-of-range inputs land in the zero pad).
    The same band is reused for every width tile, so it is O(wt^2*Cin*Cout) and cheap to build.
    """
    Cin, Cout, K, _ = w_deconv.shape
    w32 = w_deconv.astype(jnp.float32)
    V = jnp.zeros((2, 2, Cin, 2, 2, Cout), jnp.float32)        # [dh, dj, ci, p, q, c]
    for dh in range(2):
        for dj in range(2):
            for p in range(2):
                for q in range(2):
                    kh, kw = p + 1 - 2 * dh, q + 1 - 2 * dj
                    if 0 <= kh < K and 0 <= kw < K:
                        V = V.at[dh, dj, :, p, q, :].set(w32[:, :, kh, kw])
    # shift[dj, j', j] = 1 iff j' == j + dj  (local, wt-sized — no O(W^2) dense intermediate)
    shift = jnp.stack([jnp.eye(wt + 1, wt, k=0, dtype=jnp.float32),
                       jnp.eye(wt + 1, wt, k=-1, dtype=jnp.float32)], axis=0)
    band = jnp.einsum('hdipqc,dsj->hsipjqc', V, shift)          # [dh, j', ci, p, j, q, c]
    return band.reshape(2 * (wt + 1) * Cin, 4 * wt * Cout)


# ------------------------------------------ tile heuristics --------------------------------------------
def _pick_width_tile(W, Cin, Cout, in_bytes, budget_bytes=8 * 2**20):
    """Largest width tile whose padded band fits the budget (also bounds MXU FLOP inflation)."""
    for n_wt in range(1, W + 1):
        wt = _cdiv(W, n_wt)
        kk = _round_up(2 * (wt + 1) * Cin, 128)
        lan = _round_up(4 * wt * Cout, 128)
        if kk * lan * in_bytes <= budget_bytes:
            return wt
    return 1


def _pick_row_tile(m_rows, kk_p, lan_p, in_bytes, resident_bytes, budget_bytes=40 * 2**20):
    """Row tile: as close to 512 as the data allows; >=2 grid steps (v7x megacore); fits VMEM."""
    tr = min(512, _round_up(max(m_rows, 8), 8))
    if m_rows >= 16:
        tr = min(tr, _round_up(_cdiv(m_rows, 2), 8))

    def vmem_est(t):
        # 2x-buffered patches in + 2x-buffered out + in-kernel f32 matmul temp + resident band
        return 2 * t * kk_p * in_bytes + 2 * t * lan_p * 4 + t * lan_p * 4 + resident_bytes

    while tr > 8 and vmem_est(tr) > budget_bytes:
        tr -= 8
    tr = max(tr, 8)
    return tr, vmem_est(tr)


# --------------------------- pass 1: banded matmul -> BN partial sums only -----------------------------
def _stats_kernel(p_ref, w_ref, st_ref):
    y = jnp.dot(p_ref[...], w_ref[...], preferred_element_type=jnp.float32)
    st_ref[0:1, :] = jnp.sum(y, axis=0, keepdims=True)
    st_ref[1:2, :] = jnp.sum(y * y, axis=0, keepdims=True)
    # rows 2..STAT_ROWS-1 intentionally left unwritten (wrapper only reads rows 0-1)


# ------------------ pass 2: recompute banded matmul + fused BN scale/shift + ReLU -----------------------
def _conv_bn_relu_kernel(p_ref, w_ref, sc_ref, sh_ref, o_ref):
    y = jnp.dot(p_ref[...], w_ref[...], preferred_element_type=jnp.float32)
    o_ref[...] = jnp.maximum(y * sc_ref[...] + sh_ref[...], 0.0)


# ------------------------------------------------ forward ----------------------------------------------
@functools.partial(jax.jit, static_argnames=("matmul_dtype", "wt", "single_buffer_band"))
def upsamplerB_forward(x_nchw, w_deconv, b_deconv, gamma, beta, *,
                       matmul_dtype=jnp.float32, wt=None, band=None, single_buffer_band=True):
    del b_deconv  # cancels exactly under batch-stat BatchNorm (only running_mean would see it)
    N, Cin, H, W = x_nchw.shape
    _, Cout, _, _ = w_deconv.shape
    OH, OW = 2 * H, 2 * W
    in_bytes = jnp.dtype(matmul_dtype).itemsize

    if band is not None:
        assert wt is not None, "pass the wt used to build the cached band"
    if wt is None:
        wt = _pick_width_tile(W, Cin, Cout, in_bytes)
    n_wt = _cdiv(W, wt)
    w_cols = n_wt * wt                                        # >= W; extra columns are zero-padded

    KKt = 2 * (wt + 1) * Cin
    LANt = 4 * wt * Cout
    KKp = _round_up(KKt, 128)
    LANp = _round_up(LANt, 128)

    if band is None:
        band = build_deconv_band(w_deconv, wt)
    band_p = jnp.pad(band, ((0, KKp - KKt), (0, LANp - LANt))).astype(matmul_dtype)

    M = N * H
    band_bytes = KKp * LANp * in_bytes * (1 if single_buffer_band else 2)
    TR, est = _pick_row_tile(M, KKp, LANp, in_bytes, band_bytes)
    Mpad = _round_up(M, TR)
    nsteps = Mpad // TR
    vmem_limit = int(min(48 * 2**20, max(32 * 2**20, 2 * est)))   # <=48 MiB keeps v7x headroom

    # ---- patches: per-(image-row, width-tile) windows with a 1-column halo; dh in {0,1} halves ----
    x = jnp.transpose(x_nchw, (0, 2, 3, 1)).astype(jnp.float32)            # NHWC
    xp = jnp.pad(x, ((0, 0), (0, 1), (0, w_cols + 1 - W), (0, 0)))         # [N, H+1, w_cols+1, Cin]
    wins = [xp[:, :, jt * wt: jt * wt + wt + 1, :] for jt in range(n_wt)]
    xw = jnp.stack(wins, axis=2)                                           # [N, H+1, n_wt, wt+1, Cin]
    r0 = xw[:, :H].reshape(N, H, n_wt, (wt + 1) * Cin)                     # dh = 0 taps
    r1 = xw[:, 1:H + 1].reshape(N, H, n_wt, (wt + 1) * Cin)                # dh = 1 taps
    patches = jnp.concatenate([r0, r1], axis=-1)                           # [N, H, n_wt, KKt]
    patches = jnp.transpose(patches, (2, 0, 1, 3)).reshape(n_wt, M, KKt)
    patches = jnp.pad(patches, ((0, 0), (0, Mpad - M), (0, KKp - KKt))).astype(matmul_dtype)

    grid = (nsteps, n_wt)                                                  # both axes parallel
    cparams = pltpu.CompilerParams(dimension_semantics=("parallel", "parallel"),
                                   vmem_limit_bytes=vmem_limit)

    band_kwargs = {"pipeline_mode": pl.Buffered(1)} if single_buffer_band else {}
    band_spec = pl.BlockSpec((KKp, LANp), lambda i, j: (0, 0), **band_kwargs)   # resident, 1 buffer
    patch_spec = pl.BlockSpec((None, TR, KKp), lambda i, j: (j, i, 0))

    # ---- pass 1: deconv matmul + per-step BN partials (tiny output; no y-slab HBM round trip) ----
    stats = pl.pallas_call(
        _stats_kernel,
        out_shape=jax.ShapeDtypeStruct((n_wt, nsteps * STAT_ROWS, LANp), jnp.float32),
        grid=grid,
        in_specs=[patch_spec, band_spec],
        out_specs=pl.BlockSpec((None, STAT_ROWS, LANp), lambda i, j: (j, i, 0)),
        compiler_params=cparams,
    )(patches, band_p)

    # ---- fold partials (padded rows / out-of-range columns contribute exact zeros) ----
    st = stats.reshape(n_wt, nsteps, STAT_ROWS, LANp)[:, :, :2, :LANt]
    col = jnp.sum(st, axis=1).reshape(n_wt, 2, 2, wt, 2, Cout)             # [jt, stat, p, jl, q, c]
    sum_c = jnp.sum(col[:, 0], axis=(0, 1, 2, 3))
    sq_c = jnp.sum(col[:, 1], axis=(0, 1, 2, 3))
    cnt = jnp.float32(N * OH * OW)
    mean_c = sum_c / cnt
    # E[y^2] - mean^2 in f32: acceptable at eps=1e-3 (see review); switch to a shifted/Welford merge
    # if production activations carry large per-channel means.
    var_c = jnp.maximum(sq_c / cnt - mean_c * mean_c, 0.0)
    inv_c = jax.lax.rsqrt(var_c + EPS)
    scale_c = gamma.astype(jnp.float32) * inv_c
    shift_c = beta.astype(jnp.float32) - mean_c * scale_c
    reps = LANt // Cout
    scale_row = jnp.pad(jnp.tile(scale_c, reps), (0, LANp - LANt))[None, :]
    shift_row = jnp.pad(jnp.tile(shift_c, reps), (0, LANp - LANt))[None, :]

    # ---- pass 2: recompute the banded matmul and write the normalized+ReLU result, lane-dense ----
    out_slab = pl.pallas_call(
        _conv_bn_relu_kernel,
        out_shape=jax.ShapeDtypeStruct((n_wt, Mpad, LANp), jnp.float32),
        grid=grid,
        in_specs=[patch_spec, band_spec,
                  pl.BlockSpec((1, LANp), lambda i, j: (0, 0)),
                  pl.BlockSpec((1, LANp), lambda i, j: (0, 0))],
        out_specs=pl.BlockSpec((None, TR, LANp), lambda i, j: (j, i, 0)),
        compiler_params=cparams,
    )(patches, band_p, scale_row, shift_row)

    # ---- wrapper-side layout plumbing back to NCHW ----
    o = out_slab[:, :M, :LANt].reshape(n_wt, N, H, 2, wt, 2, Cout)         # [jt, n, h, p, jl, q, c]
    o = jnp.transpose(o, (1, 2, 3, 0, 4, 5, 6)).reshape(N, OH, 2 * w_cols, Cout)[:, :, :OW, :]
    return jnp.transpose(o, (0, 3, 1, 2))


if __name__ == "__main__":
    key = jax.random.PRNGKey(0)
    N, Cin, Cout, H, W = 2, 4, 8, 16, 16
    k1, k2, k3 = jax.random.split(key, 3)

    x = jax.random.normal(k1, (N, Cin, H, W), jnp.float32)
    w_deconv = 0.1 * jax.random.normal(k2, (Cin, Cout, 3, 3), jnp.float32)   # PyTorch (Cin,Cout,kH,kW)
    b_deconv = 0.1 * jax.random.normal(k3, (Cout,), jnp.float32)
    gamma = jnp.ones((Cout,), jnp.float32)
    beta = jnp.zeros((Cout,), jnp.float32)

    # ---- pure-JAX reference (deconv + training-mode BN + ReLU) ----
    w_conv = jnp.transpose(w_deconv[:, :, ::-1, ::-1], (2, 3, 0, 1))
    x_nhwc = jnp.transpose(x, (0, 2, 3, 1))
    y_ref = jax.lax.conv_general_dilated(
        x_nhwc, w_conv, window_strides=(1, 1),
        padding=[(1, 2), (1, 2)], lhs_dilation=(2, 2),
        dimension_numbers=("NHWC", "HWIO", "NHWC")) + b_deconv
    mean = jnp.mean(y_ref, axis=(0, 1, 2), keepdims=True)
    var = jnp.mean((y_ref - mean) ** 2, axis=(0, 1, 2), keepdims=True)
    ref = jnp.maximum((y_ref - mean) * jax.lax.rsqrt(var + EPS) * gamma + beta, 0.0)
    ref = jnp.transpose(ref, (0, 3, 1, 2))

    def run(**kw):
        return jax.block_until_ready(
            upsamplerB_forward(x, w_deconv, b_deconv, gamma, beta, **kw))

    # default config (single-buffered resident band); graceful fallback to default double-buffering
    # if this jax build rejects pl.Buffered(1) on a top-level pallas_call BlockSpec.
    try:
        out = run()
        sb = True
    except Exception:   # pragma: no cover
        sb = False
        out = run(single_buffer_band=False)

    assert out.shape == (N, Cout, 2 * H, 2 * W), out.shape
    err = float(jnp.max(jnp.abs(out - ref)))
    assert jnp.allclose(out, ref, atol=2e-4, rtol=2e-4), err

    # multi width-tile path (n_wt = 2): exercises the halo'd shared band + column zero-padding
    out_wt = run(wt=8, single_buffer_band=sb)
    err_wt = float(jnp.max(jnp.abs(out_wt - ref)))
    assert jnp.allclose(out_wt, ref, atol=2e-4, rtol=2e-4), err_wt

    # bf16 matmul inputs (production / bandwidth-bound config) — looser tolerance vs the f32 ref
    out_bf = run(matmul_dtype=jnp.bfloat16, single_buffer_band=sb)
    err_bf = float(jnp.max(jnp.abs(out_bf - ref)))
    assert jnp.allclose(out_bf, ref, atol=1e-1, rtol=1e-1), err_bf

    print("KERNEL_OK")
</pallas_src>

<mosaic_0001>
module attributes {stable_mosaic.version = 11 : i64} {
  func.func @_stats_kernel(%arg0: i32, %arg1: i32, %arg2: memref<1x16x256xf32, #tpu.memory_space<vmem>>, %arg3: memref<256x512xf32, #tpu.memory_space<vmem>>, %arg4: memref<1x8x512xf32, #tpu.memory_space<vmem>>) attributes {dimension_semantics = [#tpu.dimension_semantics<parallel>, #tpu.dimension_semantics<parallel>], iteration_bounds = array<i64: 2, 1>, scalar_prefetch = 0 : i64, scratch_operands = 0 : i64, tpu.core_type = #tpu.core_type<tc>, window_params = [{transform_indices = @transform_0, window_bounds = array<i64: 1, 16, 256>}, {pipeline_mode = #tpu.pipeline_mode<synchronous>, transform_indices = @transform_1, window_bounds = array<i64: 256, 512>}, {transform_indices = @transform_2, window_bounds = array<i64: 1, 8, 512>}]} {
    %c0 = arith.constant 0 : index
    %c0_0 = arith.constant 0 : index
    %c0_1 = arith.constant 0 : index
    %0 = vector.load %arg2[%c0, %c0_0, %c0_1] : memref<1x16x256xf32, #tpu.memory_space<vmem>>, vector<1x16x256xf32>
    %1 = vector.shape_cast %0 : vector<1x16x256xf32> to vector<16x256xf32>
    %c0_2 = arith.constant 0 : index
    %c0_3 = arith.constant 0 : index
    %2 = vector.load %arg3[%c0_2, %c0_3] : memref<256x512xf32, #tpu.memory_space<vmem>>, vector<256x512xf32>
    %cst = arith.constant dense<0.000000e+00> : vector<16x512xf32>
    %3 = tpu.matmul %1, %2, %cst {dimension_numbers = #tpu.dot_dimension_numbers<[1], [0], [0], [1], [0, 0, 1, 1], [], []>} : vector<16x256xf32>, vector<256x512xf32>, vector<16x512xf32> -> vector<16x512xf32>
    %cst_4 = arith.constant dense<0.000000e+00> : vector<512xf32>
    %4 = vector.multi_reduction <add>, %3, %cst_4 [0] : vector<16x512xf32> to vector<512xf32>
    %5 = vector.shape_cast %4 : vector<512xf32> to vector<1x512xf32>
    %c0_5 = arith.constant 0 : index
    %c0_6 = arith.constant 0 : index
    %c0_7 = arith.constant 0 : index
    %6 = vector.load %arg4[%c0_5, %c0_6, %c0_7] : memref<1x8x512xf32, #tpu.memory_space<vmem>>, vector<1x1x512xf32>
    %7 = vector.shape_cast %6 : vector<1x1x512xf32> to vector<1x512xf32>
    %8 = vector.shape_cast %5 : vector<1x512xf32> to vector<1x1x512xf32>
    tpu.vector_store %arg4[%c0_5, %c0_6, %c0_7], %8 {strides = array<i32>} : memref<1x8x512xf32, #tpu.memory_space<vmem>>, vector<1x1x512xf32>,
    %9 = arith.mulf %3, %3 : vector<16x512xf32>
    %cst_8 = arith.constant dense<0.000000e+00> : vector<512xf32>
    %10 = vector.multi_reduction <add>, %9, %cst_8 [0] : vector<16x512xf32> to vector<512xf32>
    %11 = vector.shape_cast %10 : vector<512xf32> to vector<1x512xf32>
    %c0_9 = arith.constant 0 : index
    %c1 = arith.constant 1 : index
    %c0_10 = arith.constant 0 : index
    %12 = vector.load %arg4[%c0_9, %c1, %c0_10] : memref<1x8x512xf32, #tpu.memory_space<vmem>>, vector<1x1x512xf32>
    %13 = vector.shape_cast %12 : vector<1x1x512xf32> to vector<1x512xf32>
    %14 = vector.shape_cast %11 : vector<1x512xf32> to vector<1x1x512xf32>
    tpu.vector_store %arg4[%c0_9, %c1, %c0_10], %14 {strides = array<i32>} : memref<1x8x512xf32, #tpu.memory_space<vmem>>, vector<1x1x512xf32>,
    return
  }
  func.func @transform_0(%arg0: i32, %arg1: i32) -> (i32, i32, i32) {
    %c0_i32 = arith.constant 0 : i32
    %c0_i32_0 = arith.constant 0 : i32
    return %arg1, %arg0, %c0_i32 : i32, i32, i32
  }
  func.func @transform_1(%arg0: i32, %arg1: i32) -> (i32, i32) {
    %c0_i32 = arith.constant 0 : i32
    %c0_i32_0 = arith.constant 0 : i32
    %c0_i32_1 = arith.constant 0 : i32
    return %c0_i32, %c0_i32_0 : i32, i32
  }
  func.func @transform_2(%arg0: i32, %arg1: i32) -> (i32, i32, i32) {
    %c0_i32 = arith.constant 0 : i32
    %c0_i32_0 = arith.constant 0 : i32
    return %arg1, %arg0, %c0_i32 : i32, i32, i32
  }
}

module attributes {stable_mosaic.version = 11 : i64} {
  func.func @_conv_bn_relu_kernel(%arg0: i32, %arg1: i32, %arg2: memref<1x16x256xf32, #tpu.memory_space<vmem>>, %arg3: memref<256x512xf32, #tpu.memory_space<vmem>>, %arg4: memref<1x512xf32, #tpu.memory_space<vmem>>, %arg5: memref<1x512xf32, #tpu.memory_space<vmem>>, %arg6: memref<1x16x512xf32, #tpu.memory_space<vmem>>) attributes {dimension_semantics = [#tpu.dimension_semantics<parallel>, #tpu.dimension_semantics<parallel>], iteration_bounds = array<i64: 2, 1>, scalar_prefetch = 0 : i64, scratch_operands = 0 : i64, tpu.core_type = #tpu.core_type<tc>, window_params = [{transform_indices = @transform_0, window_bounds = array<i64: 1, 16, 256>}, {pipeline_mode = #tpu.pipeline_mode<synchronous>, transform_indices = @transform_1, window_bounds = array<i64: 256, 512>}, {pipeline_mode = #tpu.pipeline_mode<synchronous>, transform_indices = @transform_2, window_bounds = array<i64: 1, 512>}, {pipeline_mode = #tpu.pipeline_mode<synchronous>, transform_indices = @transform_3, window_bounds = array<i64: 1, 512>}, {transform_indices = @transform_4, window_bounds = array<i64: 1, 16, 512>}]} {
    %c0 = arith.constant 0 : index
    %c0_0 = arith.constant 0 : index
    %c0_1 = arith.constant 0 : index
    %0 = vector.load %arg2[%c0, %c0_0, %c0_1] : memref<1x16x256xf32, #tpu.memory_space<vmem>>, vector<1x16x256xf32>
    %1 = vector.shape_cast %0 : vector<1x16x256xf32> to vector<16x256xf32>
    %c0_2 = arith.constant 0 : index
    %c0_3 = arith.constant 0 : index
    %2 = vector.load %arg3[%c0_2, %c0_3] : memref<256x512xf32, #tpu.memory_space<vmem>>, vector<256x512xf32>
    %cst = arith.constant dense<0.000000e+00> : vector<16x512xf32>
    %3 = tpu.matmul %1, %2, %cst {dimension_numbers = #tpu.dot_dimension_numbers<[1], [0], [0], [1], [0, 0, 1, 1], [], []>} : vector<16x256xf32>, vector<256x512xf32>, vector<16x512xf32> -> vector<16x512xf32>
    %c0_4 = arith.constant 0 : index
    %c0_5 = arith.constant 0 : index
    %4 = vector.load %arg4[%c0_4, %c0_5] : memref<1x512xf32, #tpu.memory_space<vmem>>, vector<1x512xf32>
    %5 = vector.broadcast %4 : vector<1x512xf32> to vector<16x512xf32>
    %6 = arith.mulf %3, %5 : vector<16x512xf32>
    %c0_6 = arith.constant 0 : index
    %c0_7 = arith.constant 0 : index
    %7 = vector.load %arg5[%c0_6, %c0_7] : memref<1x512xf32, #tpu.memory_space<vmem>>, vector<1x512xf32>
    %8 = vector.broadcast %7 : vector<1x512xf32> to vector<16x512xf32>
    %9 = arith.addf %6, %8 : vector<16x512xf32>
    %cst_8 = arith.constant 0.000000e+00 : f32
    %10 = vector.broadcast %cst_8 : f32 to vector<16x512xf32>
    %11 = arith.maximumf %9, %10 : vector<16x512xf32>
    %c0_9 = arith.constant 0 : index
    %c0_10 = arith.constant 0 : index
    %c0_11 = arith.constant 0 : index
    %12 = vector.load %arg6[%c0_9, %c0_10, %c0_11] : memref<1x16x512xf32, #tpu.memory_space<vmem>>, vector<1x16x512xf32>
    %13 = vector.shape_cast %12 : vector<1x16x512xf32> to vector<16x512xf32>
    %14 = vector.shape_cast %11 : vector<16x512xf32> to vector<1x16x512xf32>
    tpu.vector_store %arg6[%c0_9, %c0_10, %c0_11], %14 {strides = array<i32>} : memref<1x16x512xf32, #tpu.memory_space<vmem>>, vector<1x16x512xf32>,
    return
  }
  func.func @transform_0(%arg0: i32, %arg1: i32) -> (i32, i32, i32) {
    %c0_i32 = arith.constant 0 : i32
    %c0_i32_0 = arith.constant 0 : i32
    return %arg1, %arg0, %c0_i32 : i32, i32, i32
  }
  func.func @transform_1(%arg0: i32, %arg1: i32) -> (i32, i32) {
    %c0_i32 = arith.constant 0 : i32
    %c0_i32_0 = arith.constant 0 : i32
    %c0_i32_1 = arith.constant 0 : i32
    return %c0_i32, %c0_i32_0 : i32, i32
  }
  func.func @transform_2(%arg0: i32, %arg1: i32) -> (i32, i32) {
    %c0_i32 = arith.constant 0 : i32
    %c0_i32_0 = arith.constant 0 : i32
    %c0_i32_1 = arith.constant 0 : i32
    return %c0_i32, %c0_i32_0 : i32, i32
  }
  func.func @transform_3(%arg0: i32, %arg1: i32) -> (i32, i32) {
    %c0_i32 = arith.constant 0 : i32
    %c0_i32_0 = arith.constant 0 : i32
    %c0_i32_1 = arith.constant 0 : i32
    return %c0_i32, %c0_i32_0 : i32, i32
  }
  func.func @transform_4(%arg0: i32, %arg1: i32) -> (i32, i32, i32) {
    %c0_i32 = arith.constant 0 : i32
    %c0_i32_0 = arith.constant 0 : i32
    return %arg1, %arg0, %c0_i32 : i32, i32, i32
  }
}

module attributes {stable_mosaic.version = 11 : i64} {
  func.func @_stats_kernel(%arg0: i32, %arg1: i32, %arg2: memref<1x16x256xf32, #tpu.memory_space<vmem>>, %arg3: memref<256x512xf32, #tpu.memory_space<vmem>>, %arg4: memref<1x8x512xf32, #tpu.memory_space<vmem>>) attributes {dimension_semantics = [#tpu.dimension_semantics<parallel>, #tpu.dimension_semantics<parallel>], iteration_bounds = array<i64: 2, 1>, scalar_prefetch = 0 : i64, scratch_operands = 0 : i64, tpu.core_type = #tpu.core_type<tc>, window_params = [{transform_indices = @transform_0, window_bounds = array<i64: 1, 16, 256>}, {pipeline_mode = #tpu.pipeline_mode<synchronous>, transform_indices = @transform_1, window_bounds = array<i64: 256, 512>}, {transform_indices = @transform_2, window_bounds = array<i64: 1, 8, 512>}]} {
    %c0 = arith.constant 0 : index
    %c0_0 = arith.constant 0 : index
    %c0_1 = arith.constant 0 : index
    %0 = vector.load %arg2[%c0, %c0_0, %c0_1] : memref<1x16x256xf32, #tpu.memory_space<vmem>>, vector<1x16x256xf32>
    %1 = vector.shape_cast %0 : vector<1x16x256xf32> to vector<16x256xf32>
    %c0_2 = arith.constant 0 : index
    %c0_3 = arith.constant 0 : index
    %2 = vector.load %arg3[%c0_2, %c0_3] : memref<256x512xf32, #tpu.memory_space<vmem>>, vector<256x512xf32>
    %cst = arith.constant dense<0.000000e+00> : vector<16x512xf32>
    %3 = tpu.matmul %1, %2, %cst {dimension_numbers = #tpu.dot_dimension_numbers<[1], [0], [0], [1], [0, 0, 1, 1], [], []>} : vector<16x256xf32>, vector<256x512xf32>, vector<16x512xf32> -> vector<16x512xf32>
    %cst_4 = arith.constant dense<0.000000e+00> : vector<512xf32>
    %4 = vector.multi_reduction <add>, %3, %cst_4 [0] : vector<16x512xf32> to vector<512xf32>
    %5 = vector.shape_cast %4 : vector<512xf32> to vector<1x512xf32>
    %c0_5 = arith.constant 0 : index
    %c0_6 = arith.constant 0 : index
    %c0_7 = arith.constant 0 : index
    %6 = vector.load %arg4[%c0_5, %c0_6, %c0_7] : memref<1x8x512xf32, #tpu.memory_space<vmem>>, vector<1x1x512xf32>
    %7 = vector.shape_cast %6 : vector<1x1x512xf32> to vector<1x512xf32>
    %8 = vector.shape_cast %5 : vector<1x512xf32> to vector<1x1x512xf32>
    tpu.vector_store %arg4[%c0_5, %c0_6, %c0_7], %8 {strides = array<i32>} : memref<1x8x512xf32, #tpu.memory_space<vmem>>, vector<1x1x512xf32>,
    %9 = arith.mulf %3, %3 : vector<16x512xf32>
    %cst_8 = arith.constant dense<0.000000e+00> : vector<512xf32>
    %10 = vector.multi_reduction <add>, %9, %cst_8 [0] : vector<16x512xf32> to vector<512xf32>
    %11 = vector.shape_cast %10 : vector<512xf32> to vector<1x512xf32>
    %c0_9 = arith.constant 0 : index
    %c1 = arith.constant 1 : index
    %c0_10 = arith.constant 0 : index
    %12 = vector.load %arg4[%c0_9, %c1, %c0_10] : memref<1x8x512xf32, #tpu.memory_space<vmem>>, vector<1x1x512xf32>
    %13 = vector.shape_cast %12 : vector<1x1x512xf32> to vector<1x512xf32>
    %14 = vector.shape_cast %11 : vector<1x512xf32> to vector<1x1x512xf32>
    tpu.vector_store %arg4[%c0_9, %c1, %c0_10], %14 {strides = array<i32>} : memref<1x8x512xf32, #tpu.memory_space<vmem>>, vector<1x1x512xf32>,
    return
  }
  func.func @transform_0(%arg0: i32, %arg1: i32) -> (i32, i32, i32) {
    %c0_i32 = arith.constant 0 : i32
    %c0_i32_0 = arith.constant 0 : i32
    return %arg1, %arg0, %c0_i32 : i32, i32, i32
  }
  func.func @transform_1(%arg0: i32, %arg1: i32) -> (i32, i32) {
    %c0_i32 = arith.constant 0 : i32
    %c0_i32_0 = arith.constant 0 : i32
    %c0_i32_1 = arith.constant 0 : i32
    return %c0_i32, %c0_i32_0 : i32, i32
  }
  func.func @transform_2(%arg0: i32, %arg1: i32) -> (i32, i32, i32) {
    %c0_i32 = arith.constant 0 : i32
    %c0_i32_0 = arith.constant 0 : i32
    return %arg1, %arg0, %c0_i32 : i32, i32, i32
  }
}

module attributes {stable_mosaic.version = 11 : i64} {
  func.func @_conv_bn_relu_kernel(%arg0: i32, %arg1: i32, %arg2: memref<1x16x256xf32, #tpu.memory_space<vmem>>, %arg3: memref<256x512xf32, #tpu.memory_space<vmem>>, %arg4: memref<1x512xf32, #tpu.memory_space<vmem>>, %arg5: memref<1x512xf32, #tpu.memory_space<vmem>>, %arg6: memref<1x16x512xf32, #tpu.memory_space<vmem>>) attributes {dimension_semantics = [#tpu.dimension_semantics<parallel>, #tpu.dimension_semantics<parallel>], iteration_bounds = array<i64: 2, 1>, scalar_prefetch = 0 : i64, scratch_operands = 0 : i64, tpu.core_type = #tpu.core_type<tc>, window_params = [{transform_indices = @transform_0, window_bounds = array<i64: 1, 16, 256>}, {pipeline_mode = #tpu.pipeline_mode<synchronous>, transform_indices = @transform_1, window_bounds = array<i64: 256, 512>}, {pipeline_mode = #tpu.pipeline_mode<synchronous>, transform_indices = @transform_2, window_bounds = array<i64: 1, 512>}, {pipeline_mode = #tpu.pipeline_mode<synchronous>, transform_indices = @transform_3, window_bounds = array<i64: 1, 512>}, {transform_indices = @transform_4, window_bounds = array<i64: 1, 16, 512>}]} {
    %c0 = arith.constant 0 : index
    %c0_0 = arith.constant 0 : index
    %c0_1 = arith.constant 0 : index
    %0 = vector.load %arg2[%c0, %c0_0, %c0_1] : memref<1x16x256xf32, #tpu.memory_space<vmem>>, vector<1x16x256xf32>
    %1 = vector.shape_cast %0 : vector<1x16x256xf32> to vector<16x256xf32>
    %c0_2 = arith.constant 0 : index
    %c0_3 = arith.constant 0 : index
    %2 = vector.load %arg3[%c0_2, %c0_3] : memref<256x512xf32, #tpu.memory_space<vmem>>, vector<256x512xf32>
    %cst = arith.constant dense<0.000000e+00> : vector<16x512xf32>
    %3 = tpu.matmul %1, %2, %cst {dimension_numbers = #tpu.dot_dimension_numbers<[1], [0], [0], [1], [0, 0, 1, 1], [], []>} : vector<16x256xf32>, vector<256x512xf32>, vector<16x512xf32> -> vector<16x512xf32>
    %c0_4 = arith.constant 0 : index
    %c0_5 = arith.constant 0 : index
    %4 = vector.load %arg4[%c0_4, %c0_5] : memref<1x512xf32, #tpu.memory_space<vmem>>, vector<1x512xf32>
    %5 = vector.broadcast %4 : vector<1x512xf32> to vector<16x512xf32>
    %6 = arith.mulf %3, %5 : vector<16x512xf32>
    %c0_6 = arith.constant 0 : index
    %c0_7 = arith.constant 0 : index
    %7 = vector.load %arg5[%c0_6, %c0_7] : memref<1x512xf32, #tpu.memory_space<vmem>>, vector<1x512xf32>
    %8 = vector.broadcast %7 : vector<1x512xf32> to vector<16x512xf32>
    %9 = arith.addf %6, %8 : vector<16x512xf32>
    %cst_8 = arith.constant 0.000000e+00 : f32
    %10 = vector.broadcast %cst_8 : f32 to vector<16x512xf32>
    %11 = arith.maximumf %9, %10 : vector<16x512xf32>
    %c0_9 = arith.constant 0 : index
    %c0_10 = arith.constant 0 : index
    %c0_11 = arith.constant 0 : index
    %12 = vector.load %arg6[%c0_9, %c0_10, %c0_11] : memref<1x16x512xf32, #tpu.memory_space<vmem>>, vector<1x16x512xf32>
    %13 = vector.shape_cast %12 : vector<1x16x512xf32> to vector<16x512xf32>
    %14 = vector.shape_cast %11 : vector<16x512xf32> to vector<1x16x512xf32>
    tpu.vector_store %arg6[%c0_9, %c0_10, %c0_11], %14 {strides = array<i32>} : memref<1x16x512xf32, #tpu.memory_space<vmem>>, vector<1x16x512xf32>,
    return
  }
  func.func @transform_0(%arg0: i32, %arg1: i32) -> (i32, i32, i32) {
    %c0_i32 = arith.constant 0 : i32
    %c0_i32_0 = arith.constant 0 : i32
    return %arg1, %arg0, %c0_i32 : i32, i32, i32
  }
  func.func @transform_1(%arg0: i32, %arg1: i32) -> (i32, i32) {
    %c0_i32 = arith.constant 0 : i32
    %c0_i32_0 = arith.constant 0 : i32
    %c0_i32_1 = arith.constant 0 : i32
    return %c0_i32, %c0_i32_0 : i32, i32
  }
  func.func @transform_2(%arg0: i32, %arg1: i32) -> (i32, i32) {
    %c0_i32 = arith.constant 0 : i32
    %c0_i32_0 = arith.constant 0 : i32
    %c0_i32_1 = arith.constant 0 : i32
    return %c0_i32, %c0_i32_0 : i32, i32
  }
  func.func @transform_3(%arg0: i32, %arg1: i32) -> (i32, i32) {
    %c0_i32 = arith.constant 0 : i32
    %c0_i32_0 = arith.constant 0 : i32
    %c0_i32_1 = arith.constant 0 : i32
    return %c0_i32, %c0_i32_0 : i32, i32
  }
  func.func @transform_4(%arg0: i32, %arg1: i32) -> (i32, i32, i32) {
    %c0_i32 = arith.constant 0 : i32
    %c0_i32_0 = arith.constant 0 : i32
    return %arg1, %arg0, %c0_i32 : i32, i32, i32
  }
}

</mosaic_0001>

<llo_original>
// kernel: tile.13
$region0: #{tile.13}
  #allocation0 [shape = 's32[1]{0}', space=sflag, size = 0x4, scoped, tag = 'scoped memory for tile.13']
  %s0 = inlined_call_operand.vmem [shape: f32[8], index: 0, kind: input, shape index: {}]
  %s1 = inlined_call_operand.vmem [shape: f32[64,8], index: 1, kind: output, shape index: {}]
  // Predicated region
  $region2: #{tile.13} parent=0 // pred_check
    _
  $region3: #{tile.13} parent=0 // pred_check_branch
    %3 = sbr.rel (0) target = $region5
  $region4: #{tile.13} parent=0 // pred_region
    _
  $region5: #{tile.13} parent=0 // pred_fallthru
    _
  %v4 = vld [vmem:[%s0] ss:$0 sm:$0xff]
  %5 = vst [vmem:[%s1] sm:$0xff] %v4
  %s6 = scalar_lea.vmem %s1, 8
  %7 = vst [vmem:[%s6] sm:$0xff] %v4
  %s8 = scalar_lea.vmem %s1, 16
  %9 = vst [vmem:[%s8] sm:$0xff] %v4
  %s10 = scalar_lea.vmem %s1, 24
  %11 = vst [vmem:[%s10] sm:$0xff] %v4
  %s12 = scalar_lea.vmem %s1, 32
  %13 = vst [vmem:[%s12] sm:$0xff] %v4
  %s14 = scalar_lea.vmem %s1, 40
  %15 = vst [vmem:[%s14] sm:$0xff] %v4
  %s16 = scalar_lea.vmem %s1, 48
  %17 = vst [vmem:[%s16] sm:$0xff] %v4
  %s18 = scalar_lea.vmem %s1, 56
  %19 = vst [vmem:[%s18] sm:$0xff] %v4

// kernel: upsamplerB_forward.2
$region0: #{upsamplerB_forward.2}
  #allocation0 [shape = 'u32[]', space=smem, size = 0x4, offset = 0x4, fixed_abs, tag = 'smem constant byte address 0x4 - core index']
  #allocation1 [shape = 'u32[144,128]{1,0:T(1,128)}', space=vmem, size = 0x12000, scoped, tag = 'internal scratch']
  %s0 = inlined_call_operand.vmem [shape: f32[1,32,256], index: 0, kind: input, shape index: {}]
  %s1 = inlined_call_operand.vmem [shape: f32[256,512], index: 1, kind: input, shape index: {}]
  %s2 = inlined_call_operand.vmem [shape: f32[1,16,512], index: 2, kind: output, shape index: {}]
  %s3 = sld [smem:[#allocation0]]
  $region41: #{upsamplerB_forward.2} parent=0
    _
  %s5 = ssub.s32 1, %s3
  %s6 = scalar_select 0, %s5, %s3
  loop: start=0, step=1, limit=4
  $region2: #{upsamplerB_forward.2} parent=0 // loop_pre_header
    _
  $region3: #{upsamplerB_forward.2} parent=0 // loop_header
    %s8 = sphi 0, %s12
    %p9 = scmp.ge.s32.totalorder %s8, 4
    %s15 = sphi 0, %s27
    %s16 = sphi 0, %s23
    %s17 = sphi 0, %s15
    %s18 = sphi 0, %s16
    %s19 = sphi 0, %s17
    %s20 = sphi 0, %s18
    %s32 = sphi 0, %s34
    %s35 = sphi 0, %s32
    %s36 = sphi 0, %s35
    %s52 = sphi 0, %s36
    %s56 = sphi 0, %s56
    %s58 = sphi 0, %s56
    %s59 = sphi 0, %s58
    %s73 = sphi 0, %s59
    %s81 = sphi 0, %s83
    %s84 = sphi 0, %s81
    %s85 = sphi 0, %s84
    %s101 = sphi 0, %s85
  $region4: #{upsamplerB_forward.2} parent=0 // loop_header_branch
    %11 = sbr.rel (%p9) target = $region8
  $region5: #{upsamplerB_forward.2} parent=0 // loop_body
    %s13 = ssub.s32 %s8, 1
    %s14 = ssub.s32 %s8, 2
    %s21 = sadd.s32 1, %s16
    %p22 = scmp.ge.s32.totalorder %s21, 1
    %s23 = scalar_select %p22, 0, %s21
    %s24 = sadd.s32 1, %s15
    %s25 = scalar_select %p22, %s24, %s15
    %p26 = scmp.ge.s32.totalorder %s25, 2
    %s27 = scalar_select %p26, 0, %s25
    %s28 = ssub.s32 %s16, %s23
    %s29 = ssub.s32 %s15, %s27
    %s30 = sor.u32 %s28, %s29
    %p31 = scmp.eq.s32.totalorder %s30, 0
    %s33 = sadd.s32 %s32, 1
    %s34 = scalar_select %p31, %s32, %s33
    %p37 = pneg %p31
    %p38 = scmp.eq.s32.totalorder %s8, 1
    %p39 = por %p37, %p38
    %p40 = scmp.ne.s32.totalorder %s32, %s35
    %p41 = scmp.eq.s32.totalorder %s8, 0
    %p42 = por %p40, %p41
    %p43 = scmp.ne.s32.totalorder %s32, %s35
    %p44 = scmp.eq.s32.totalorder %s13, 1
    %p45 = por %p43, %p44
    %p46 = scmp.ne.s32.totalorder %s35, %s36
    %p47 = scmp.eq.s32.totalorder %s13, 0
    %p48 = por %p46, %p47
    %p49 = scmp.ne.s32.totalorder %s35, %s36
    %p50 = scmp.eq.s32.totalorder %s14, 1
    %p51 = por %p49, %p50
    %p53 = scmp.ne.s32.totalorder %s36, %s52
    %p54 = scmp.eq.s32.totalorder %s14, 0
    %p55 = por %p53, %p54
    %s57 = sadd.s32 %s56, 1
    %p60 = scmp.eq.s32.totalorder %s8, 1
    %p61 = scmp.ne.s32.totalorder %s56, %s58
    %p62 = scmp.eq.s32.totalorder %s8, 0
    %p63 = por %p61, %p62
    %p64 = scmp.ne.s32.totalorder %s56, %s58
    %p65 = scmp.eq.s32.totalorder %s13, 1
    %p66 = por %p64, %p65
    %p67 = scmp.ne.s32.totalorder %s58, %s59
    %p68 = scmp.eq.s32.totalorder %s13, 0
    %p69 = por %p67, %p68
    %p70 = scmp.ne.s32.totalorder %s58, %s59
    %p71 = scmp.eq.s32.totalorder %s14, 1
    %p72 = por %p70, %p71
    %p74 = scmp.ne.s32.totalorder %s59, %s73
    %p75 = scmp.eq.s32.totalorder %s14, 0
    %p76 = por %p74, %p75
    %s77 = ssub.s32 %s16, %s23
    %s78 = ssub.s32 %s15, %s27
    %s79 = sor.u32 %s77, %s78
    %p80 = scmp.eq.s32.totalorder %s79, 0
    %s82 = sadd.s32 %s81, 1
    %s83 = scalar_select %p80, %s81, %s82
    %p86 = pneg %p80
    %p87 = scmp.eq.s32.totalorder %s8, 1
    %p88 = por %p86, %p87
    %p89 = scmp.ne.s32.totalorder %s81, %s84
    %p90 = scmp.eq.s32.totalorder %s8, 0
    %p91 = por %p89, %p90
    %p92 = scmp.ne.s32.totalorder %s81, %s84
    %p93 = scmp.eq.s32.totalorder %s13, 1
    %p94 = por %p92, %p93
    %p95 = scmp.ne.s32.totalorder %s84, %s85
    %p96 = scmp.eq.s32.totalorder %s13, 0
    %p97 = por %p95, %p96
    %p98 = scmp.ne.s32.totalorder %s84, %s85
    %p99 = scmp.eq.s32.totalorder %s14, 1
    %p100 = por %p98, %p99
    %p102 = scmp.ne.s32.totalorder %s85, %s101
    %p103 = scmp.eq.s32.totalorder %s14, 0
    %p104 = por %p102, %p103
    %p105 = scmp.le.s32.totalorder 1, %s8
    %p106 = scmp.lt.s32.totalorder %s8, 3
    %p107 = pnand %p105, %p106
    %p108 = pneg %p107
    // Predicated region
    $region9: #{upsamplerB_forward.2} parent=5 // pred_check
      _
    $region10: #{upsamplerB_forward.2} parent=5 // pred_check_branch
      %110 = sbr.rel (%p107) target = $region12
    $region11: #{upsamplerB_forward.2} parent=5 // pred_region
      %s111 = ssub.s32 %s8, 1
      // Predicated region
      $region13: #{upsamplerB_forward.2} parent=11 // pred_check
        %p112 = pneg %p69
      $region14: #{upsamplerB_forward.2} parent=11 // pred_check_branch
        %114 = sbr.rel (%p112) target = $region16
      $region15: #{upsamplerB_forward.2} parent=11 // pred_region
        _
      $region16: #{upsamplerB_forward.2} parent=11 // pred_fallthru
        _
    $region12: #{upsamplerB_forward.2} parent=5 // pred_fallthru
      _
    %p115 = scmp.lt.s32.totalorder %s8, 2
    // Predicated region
    $region17: #{upsamplerB_forward.2} parent=5 // pred_check
      %p116 = pneg %p115
    $region18: #{upsamplerB_forward.2} parent=5 // pred_check_branch
      %118 = sbr.rel (%p116) target = $region20
    $region19: #{upsamplerB_forward.2} parent=5 // pred_region
      // Predicated region
      $region21: #{upsamplerB_forward.2} parent=19 // pred_check
        %p119 = pneg %p42
      $region22: #{upsamplerB_forward.2} parent=19 // pred_check_branch
        %121 = sbr.rel (%p119) target = $region24
      $region23: #{upsamplerB_forward.2} parent=19 // pred_region
        %s122 = smul.u32 2, %s15
        %p123 = scmp.lt.s32.totalorder %s16, 0
        %s124 = scalar_select %p123, %s16, 0
        %p125 = scmp.lt.s32.totalorder %s122, 3
        %s126 = scalar_select %p125, %s122, 3
        %s127 = smul.addr %s126, 2
        %s128 = smul.addr %s124, 8
        %s129 = sadd.s32 %s127, %s128
        %s130 = smul.addr %s129, 8
        %s131 = scalar_lea.vmem %s0, %s130
        %s132 = smul.u32 2, %s15
      $region24: #{upsamplerB_forward.2} parent=19 // pred_fallthru
        _
    $region20: #{upsamplerB_forward.2} parent=5 // pred_fallthru
      _
    %p133 = scmp.le.s32.totalorder 1, %s8
    %p134 = scmp.lt.s32.totalorder %s8, 3
    %p135 = pnand %p133, %p134
    %p136 = pneg %p135
    // Predicated region
    $region25: #{upsamplerB_forward.2} parent=5 // pred_check
      _
    $region26: #{upsamplerB_forward.2} parent=5 // pred_check_branch
      %138 = sbr.rel (%p135) target = $region28
    $region27: #{upsamplerB_forward.2} parent=5 // pred_region
      %s139 = ssub.s32 %s8, 1
      %s140 = smul.u32 2, %s17
      %p141 = scmp.lt.s32.totalorder %s18, 0
      %s142 = scalar_select %p141, %s18, 0
      %p143 = scmp.lt.s32.totalorder %s140, 3
      %s144 = scalar_select %p143, %s140, 3
      %s145 = smul.addr %s144, 2
      %s146 = smul.addr %s142, 8
      %s147 = sadd.s32 %s145, %s146
      %s148 = smul.addr %s147, 8
      %s149 = scalar_lea.vmem %s0, %s148
      %p150 = pneg %p48
      %p151 = pneg %p45
      %p152 = pneg %p69
      %p153 = pneg %p66
      %p154 = pneg %p97
      %p155 = pneg %p94
      %p156 = scmp.lt.s32.totalorder %s18, 0
      %s157 = scalar_select %p156, %s18, 0
      %p158 = scmp.lt.s32.totalorder %s17, 1
      %s159 = scalar_select %p158, %s17, 1
      %s160 = smul.addr %s159, 4
      %s161 = smul.addr %s157, 8
      %s162 = sadd.s32 %s160, %s161
      %s163 = smul.addr %s162, 8
      %s164 = scalar_lea.vmem %s2, %s163
      %s165 = smul.u32 2, %s17
      %p166 = scmp.lt.s32.totalorder %s18, 0
      %s167 = scalar_select %p166, %s18, 0
      %p168 = scmp.lt.s32.totalorder %s165, 3
      %s169 = scalar_select %p168, %s165, 3
      %s170 = smul.addr %s169, 2
      %s171 = smul.addr %s167, 8
      %s172 = sadd.s32 %s170, %s171
      %s173 = smul.addr %s172, 8
      %s174 = scalar_lea.vmem %s0, %s173
      %s175 = smul.u32 2, %s17
      %p176 = scmp.lt.s32.totalorder %s18, 0
      %s177 = scalar_select %p176, %s18, 0
      %p178 = scmp.lt.s32.totalorder %s17, 1
      %s179 = scalar_select %p178, %s17, 1
      %s180 = smul.addr %s179, 4
      %s181 = smul.addr %s177, 8
      %s182 = sadd.s32 %s180, %s181
      %s183 = smul.addr %s182, 8
      %s184 = scalar_lea.vmem %s2, %s183
      %v185 = vld [vmem:[%s174] sm:$0xff]
      %v186 = vld [vmem:[%s174 + $0x8] sm:$0xff]
      %v187 = vld [vmem:[%s174 + $0x10] sm:$0xff]
      %v188 = vld [vmem:[%s174 + $0x18] sm:$0xff]
      %v189 = vld [vmem:[%s1] sm:$0xff]
      %v190 = vld [vmem:[%s1 + $0x8] sm:$0xff]
      %v191 = vld [vmem:[%s1 + $0x10] sm:$0xff]
      %v192 = vld [vmem:[%s1 + $0x18] sm:$0xff]
      %v193 = vld [vmem:[%s1 + $0x20] sm:$0xff]
      %v194 = vld [vmem:[%s1 + $0x28] sm:$0xff]
      %v195 = vld [vmem:[%s1 + $0x30] sm:$0xff]
      %v196 = vld [vmem:[%s1 + $0x38] sm:$0xff]
      %v197 = vld [vmem:[%s1 + $0x40] sm:$0xff]
      %v198 = vld [vmem:[%s1 + $0x48] sm:$0xff]
      %v199 = vld [vmem:[%s1 + $0x50] sm:$0xff]
      %v200 = vld [vmem:[%s1 + $0x58] sm:$0xff]
      %v201 = vld [vmem:[%s1 + $0x60] sm:$0xff]
      %v202 = vld [vmem:[%s1 + $0x68] sm:$0xff]
      %v203 = vld [vmem:[%s1 + $0x70] sm:$0xff]
      %v204 = vld [vmem:[%s1 + $0x78] sm:$0xff]
      %v205 = vld [vmem:[%s1 + $0x80] sm:$0xff]
      %v206 = vld [vmem:[%s1 + $0x88] sm:$0xff]
      %v207 = vld [vmem:[%s1 + $0x90] sm:$0xff]
      %v208 = vld [vmem:[%s1 + $0x98] sm:$0xff]
      %v209 = vld [vmem:[%s1 + $0xa0] sm:$0xff]
      %v210 = vld [vmem:[%s1 + $0xa8] sm:$0xff]
      %v211 = vld [vmem:[%s1 + $0xb0] sm:$0xff]
      %v212 = vld [vmem:[%s1 + $0xb8] sm:$0xff]
      %v213 = vld [vmem:[%s1 + $0xc0] sm:$0xff]
      %v214 = vld [vmem:[%s1 + $0xc8] sm:$0xff]
      %v215 = vld [vmem:[%s1 + $0xd0] sm:$0xff]
      %v216 = vld [vmem:[%s1 + $0xd8] sm:$0xff]
      %v217 = vld [vmem:[%s1 + $0xe0] sm:$0xff]
      %v218 = vld [vmem:[%s1 + $0xe8] sm:$0xff]
      %v219 = vld [vmem:[%s1 + $0xf0] sm:$0xff]
      %v220 = vld [vmem:[%s1 + $0xf8] sm:$0xff]
      %v221 = vld [vmem:[%s1 + $0x100] sm:$0xff]
      %v222 = vld [vmem:[%s1 + $0x108] sm:$0xff]
      %v223 = vld [vmem:[%s1 + $0x110] sm:$0xff]
      %v224 = vld [vmem:[%s1 + $0x118] sm:$0xff]
      %v225 = vld [vmem:[%s1 + $0x120] sm:$0xff]
      %v226 = vld [vmem:[%s1 + $0x128] sm:$0xff]
      %v227 = vld [vmem:[%s1 + $0x130] sm:$0xff]
      %v228 = vld [vmem:[%s1 + $0x138] sm:$0xff]
      %v229 = vld [vmem:[%s1 + $0x140] sm:$0xff]
      %v230 = vld [vmem:[%s1 + $0x148] sm:$0xff]
      %v231 = vld [vmem:[%s1 + $0x150] sm:$0xff]
      %v232 = vld [vmem:[%s1 + $0x158] sm:$0xff]
      %v233 = vld [vmem:[%s1 + $0x160] sm:$0xff]
      %v234 = vld [vmem:[%s1 + $0x168] sm:$0xff]
      %v235 = vld [vmem:[%s1 + $0x170] sm:$0xff]
      %v236 = vld [vmem:[%s1 + $0x178] sm:$0xff]
      %v237 = vld [vmem:[%s1 + $0x180] sm:$0xff]
      %v238 = vld [vmem:[%s1 + $0x188] sm:$0xff]
      %v239 = vld [vmem:[%s1 + $0x190] sm:$0xff]
      %v240 = vld [vmem:[%s1 + $0x198] sm:$0xff]
      %v241 = vld [vmem:[%s1 + $0x1a0] sm:$0xff]
      %v242 = vld [vmem:[%s1 + $0x1a8] sm:$0xff]
      %v243 = vld [vmem:[%s1 + $0x1b0] sm:$0xff]
      %v244 = vld [vmem:[%s1 + $0x1b8] sm:$0xff]
      %v245 = vld [vmem:[%s1 + $0x1c0] sm:$0xff]
      %v246 = vld [vmem:[%s1 + $0x1c8] sm:$0xff]
      %v247 = vld [vmem:[%s1 + $0x1d0] sm:$0xff]
      %v248 = vld [vmem:[%s1 + $0x1d8] sm:$0xff]
      %v249 = vld [vmem:[%s1 + $0x1e0] sm:$0xff]
      %v250 = vld [vmem:[%s1 + $0x1e8] sm:$0xff]
      %v251 = vld [vmem:[%s1 + $0x1f0] sm:$0xff]
      %v252 = vld [vmem:[%s1 + $0x1f8] sm:$0xff]
      %v253 = vld [vmem:[%s1 + $0x200] sm:$0xff]
      %v254 = vld [vmem:[%s1 + $0x208] sm:$0xff]
      %v255 = vld [vmem:[%s1 + $0x210] sm:$0xff]
      %v256 = vld [vmem:[%s1 + $0x218] sm:$0xff]
      %v257 = vld [vmem:[%s1 + $0x220] sm:$0xff]
      %v258 = vld [vmem:[%s1 + $0x228] sm:$0xff]
      %v259 = vld [vmem:[%s1 + $0x230] sm:$0xff]
      %v260 = vld [vmem:[%s1 + $0x238] sm:$0xff]
      %v261 = vld [vmem:[%s1 + $0x240] sm:$0xff]
      %v262 = vld [vmem:[%s1 + $0x248] sm:$0xff]
      %v263 = vld [vmem:[%s1 + $0x250] sm:$0xff]
      %v264 = vld [vmem:[%s1 + $0x258] sm:$0xff]
      %v265 = vld [vmem:[%s1 + $0x260] sm:$0xff]
      %v266 = vld [vmem:[%s1 + $0x268] sm:$0xff]
      %v267 = vld [vmem:[%s1 + $0x270] sm:$0xff]
      %v268 = vld [vmem:[%s1 + $0x278] sm:$0xff]
      %v269 = vld [vmem:[%s1 + $0x280] sm:$0xff]
      %v270 = vld [vmem:[%s1 + $0x288] sm:$0xff]
      %v271 = vld [vmem:[%s1 + $0x290] sm:$0xff]
      %v272 = vld [vmem:[%s1 + $0x298] sm:$0xff]
      %v273 = vld [vmem:[%s1 + $0x2a0] sm:$0xff]
      %v274 = vld [vmem:[%s1 + $0x2a8] sm:$0xff]
      %v275 = vld [vmem:[%s1 + $0x2b0] sm:$0xff]
      %v276 = vld [vmem:[%s1 + $0x2b8] sm:$0xff]
      %v277 = vld [vmem:[%s1 + $0x2c0] sm:$0xff]
      %v278 = vld [vmem:[%s1 + $0x2c8] sm:$0xff]
      %v279 = vld [vmem:[%s1 + $0x2d0] sm:$0xff]
      %v280 = vld [vmem:[%s1 + $0x2d8] sm:$0xff]
      %v281 = vld [vmem:[%s1 + $0x2e0] sm:$0xff]
      %v282 = vld [vmem:[%s1 + $0x2e8] sm:$0xff]
      %v283 = vld [vmem:[%s1 + $0x2f0] sm:$0xff]
      %v284 = vld [vmem:[%s1 + $0x2f8] sm:$0xff]
      %v285 = vld [vmem:[%s1 + $0x300] sm:$0xff]
      %v286 = vld [vmem:[%s1 + $0x308] sm:$0xff]
      %v287 = vld [vmem:[%s1 + $0x310] sm:$0xff]
      %v288 = vld [vmem:[%s1 + $0x318] sm:$0xff]
      %v289 = vld [vmem:[%s1 + $0x320] sm:$0xff]
      %v290 = vld [vmem:[%s1 + $0x328] sm:$0xff]
      %v291 = vld [vmem:[%s1 + $0x330] sm:$0xff]
      %v292 = vld [vmem:[%s1 + $0x338] sm:$0xff]
      %v293 = vld [vmem:[%s1 + $0x340] sm:$0xff]
      %v294 = vld [vmem:[%s1 + $0x348] sm:$0xff]
      %v295 = vld [vmem:[%s1 + $0x350] sm:$0xff]
      %v296 = vld [vmem:[%s1 + $0x358] sm:$0xff]
      %v297 = vld [vmem:[%s1 + $0x360] sm:$0xff]
      %v298 = vld [vmem:[%s1 + $0x368] sm:$0xff]
      %v299 = vld [vmem:[%s1 + $0x370] sm:$0xff]
      %v300 = vld [vmem:[%s1 + $0x378] sm:$0xff]
      %v301 = vld [vmem:[%s1 + $0x380] sm:$0xff]
      %v302 = vld [vmem:[%s1 + $0x388] sm:$0xff]
      %v303 = vld [vmem:[%s1 + $0x390] sm:$0xff]
      %v304 = vld [vmem:[%s1 + $0x398] sm:$0xff]
      %v305 = vld [vmem:[%s1 + $0x3a0] sm:$0xff]
      %v306 = vld [vmem:[%s1 + $0x3a8] sm:$0xff]
      %v307 = vld [vmem:[%s1 + $0x3b0] sm:$0xff]
      %v308 = vld [vmem:[%s1 + $0x3b8] sm:$0xff]
      %v309 = vld [vmem:[%s1 + $0x3c0] sm:$0xff]
      %v310 = vld [vmem:[%s1 + $0x3c8] sm:$0xff]
      %v311 = vld [vmem:[%s1 + $0x3d0] sm:$0xff]
      %v312 = vld [vmem:[%s1 + $0x3d8] sm:$0xff]
      %v313 = vld [vmem:[%s1 + $0x3e0] sm:$0xff]
      %v314 = vld [vmem:[%s1 + $0x3e8] sm:$0xff]
      %v315 = vld [vmem:[%s1 + $0x3f0] sm:$0xff]
      %v316 = vld [vmem:[%s1 + $0x3f8] sm:$0xff]
      %317 = vmatprep.subr.mxu0 %v190
      %318 = vmatpush1.msra.mxu0 %v189
      %319 = vmatprep.subr.mxu0 %v194
      %320 = vmatpush1.msra.mxu0 %v193
      %321 = vmatprep.subr.mxu0 %v198
      %322 = vmatpush1.msra.mxu0 %v197
      %323 = vmatprep.subr.mxu0 %v202
      %324 = vmatpush1.msra.mxu0 %v201
      %325 = vmatprep.subr.mxu0 %v206
      %326 = vmatpush1.msra.mxu0 %v205
      %327 = vmatprep.subr.mxu0 %v210
      %328 = vmatpush1.msra.mxu0 %v209
      %329 = vmatprep.subr.mxu0 %v214
      %330 = vmatpush1.msra.mxu0 %v213
      %331 = vmatprep.subr.mxu0 %v218
      %332 = vmatpush1.msra.mxu0 %v217
      %333 = vmatprep.subr.mxu0 %v222
      %334 = vmatpush1.msra.mxu0 %v221
      %335 = vmatprep.subr.mxu0 %v226
      %336 = vmatpush1.msra.mxu0 %v225
      %337 = vmatprep.subr.mxu0 %v230
      %338 = vmatpush1.msra.mxu0 %v229
      %339 = vmatprep.subr.mxu0 %v234
      %340 = vmatpush1.msra.mxu0 %v233
      %341 = vmatprep.subr.mxu0 %v238
      %342 = vmatpush1.msra.mxu0 %v237
      %343 = vmatprep.subr.mxu0 %v242
      %344 = vmatpush1.msra.mxu0 %v241
      %345 = vmatprep.subr.mxu0 %v246
      %346 = vmatpush1.msra.mxu0 %v245
      %347 = vmatprep.subr.mxu0 %v250
      %348 = vmatpush1.msra.mxu0 %v249
      %349 = vmatprep.subr.mxu0 %v254
      %350 = vmatpush1.msra.mxu0 %v253
      %351 = vmatprep.subr.mxu0 %v258
      %352 = vmatpush1.msra.mxu0 %v257
      %353 = vmatprep.subr.mxu0 %v262
      %354 = vmatpush1.msra.mxu0 %v261
      %355 = vmatprep.subr.mxu0 %v266
      %356 = vmatpush1.msra.mxu0 %v265
      %357 = vmatprep.subr.mxu0 %v270
      %358 = vmatpush1.msra.mxu0 %v269
      %359 = vmatprep.subr.mxu0 %v274
      %360 = vmatpush1.msra.mxu0 %v273
      %361 = vmatprep.subr.mxu0 %v278
      %362 = vmatpush1.msra.mxu0 %v277
      %363 = vmatprep.subr.mxu0 %v282
      %364 = vmatpush1.msra.mxu0 %v281
      %365 = vmatprep.subr.mxu0 %v286
      %366 = vmatpush1.msra.mxu0 %v285
      %367 = vmatprep.subr.mxu0 %v290
      %368 = vmatpush1.msra.mxu0 %v289
      %369 = vmatprep.subr.mxu0 %v294
      %370 = vmatpush1.msra.mxu0 %v293
      %371 = vmatprep.subr.mxu0 %v298
      %372 = vmatpush1.msra.mxu0 %v297
      %373 = vmatprep.subr.mxu0 %v302
      %374 = vmatpush1.msra.mxu0 %v301
      %375 = vmatprep.subr.mxu0 %v306
      %376 = vmatpush1.msra.mxu0 %v305
      %377 = vmatprep.subr.mxu0 %v310
      %378 = vmatpush1.msra.mxu0 %v309
      %379 = vmatprep.subr.mxu0 %v314
      %380 = vmatpush1.msra.mxu0 %v313
      %381 = vmatprep.mubr.f32.mxu0 %v186
      %382 = vmatmul.mubr.f32.gmra.mrb[0].mxu0 %v185
      %v383 = vpop.f32.mrb[0].mxu0
      %v384 = vadd.f32 0.0, %v383
      %v385 = vpop.f32.mrb[0].mxu0
      %v386 = vadd.f32 0.0, %v385
      %387 = vmatprep.mubr.f32.mxu0 %v188
      %388 = vmatmul.mubr.f32.gmra.mrb[0].mxu0 %v187
      %v389 = vpop.f32.mrb[0].mxu0
      %v390 = vadd.f32 0.0, %v389
      %v391 = vpop.f32.mrb[0].mxu0
      %v392 = vadd.f32 0.0, %v391
      %393 = vdwg.mxu0
      %394 = vmatprep.subr.mxu0 %v192
      %395 = vmatpush1.msra.mxu0 %v191
      %396 = vmatprep.subr.mxu0 %v196
      %397 = vmatpush1.msra.mxu0 %v195
      %398 = vmatprep.subr.mxu0 %v200
      %399 = vmatpush1.msra.mxu0 %v199
      %400 = vmatprep.subr.mxu0 %v204
      %401 = vmatpush1.msra.mxu0 %v203
      %402 = vmatprep.subr.mxu0 %v208
      %403 = vmatpush1.msra.mxu0 %v207
      %404 = vmatprep.subr.mxu0 %v212
      %405 = vmatpush1.msra.mxu0 %v211
      %406 = vmatprep.subr.mxu0 %v216
      %407 = vmatpush1.msra.mxu0 %v215
      %408 = vmatprep.subr.mxu0 %v220
      %409 = vmatpush1.msra.mxu0 %v219
      %410 = vmatprep.subr.mxu0 %v224
      %411 = vmatpush1.msra.mxu0 %v223
      %412 = vmatprep.subr.mxu0 %v228
      %413 = vmatpush1.msra.mxu0 %v227
      %414 = vmatprep.subr.mxu0 %v232
      %415 = vmatpush1.msra.mxu0 %v231
      %416 = vmatprep.subr.mxu0 %v236
      %417 = vmatpush1.msra.mxu0 %v235
      %418 = vmatprep.subr.mxu0 %v240
      %419 = vmatpush1.msra.mxu0 %v239
      %420 = vmatprep.subr.mxu0 %v244
      %421 = vmatpush1.msra.mxu0 %v243
      %422 = vmatprep.subr.mxu0 %v248
      %423 = vmatpush1.msra.mxu0 %v247
      %424 = vmatprep.subr.mxu0 %v252
      %425 = vmatpush1.msra.mxu0 %v251
      %426 = vmatprep.subr.mxu0 %v256
      %427 = vmatpush1.msra.mxu0 %v255
      %428 = vmatprep.subr.mxu0 %v260
      %429 = vmatpush1.msra.mxu0 %v259
      %430 = vmatprep.subr.mxu0 %v264
      %431 = vmatpush1.msra.mxu0 %v263
      %432 = vmatprep.subr.mxu0 %v268
      %433 = vmatpush1.msra.mxu0 %v267
      %434 = vmatprep.subr.mxu0 %v272
      %435 = vmatpush1.msra.mxu0 %v271
      %436 = vmatprep.subr.mxu0 %v276
      %437 = vmatpush1.msra.mxu0 %v275
      %438 = vmatprep.subr.mxu0 %v280
      %439 = vmatpush1.msra.mxu0 %v279
      %440 = vmatprep.subr.mxu0 %v284
      %441 = vmatpush1.msra.mxu0 %v283
      %442 = vmatprep.subr.mxu0 %v288
      %443 = vmatpush1.msra.mxu0 %v287
      %444 = vmatprep.subr.mxu0 %v292
      %445 = vmatpush1.msra.mxu0 %v291
      %446 = vmatprep.subr.mxu0 %v296
      %447 = vmatpush1.msra.mxu0 %v295
      %448 = vmatprep.subr.mxu0 %v300
      %449 = vmatpush1.msra.mxu0 %v299
      %450 = vmatprep.subr.mxu0 %v304
      %451 = vmatpush1.msra.mxu0 %v303
      %452 = vmatprep.subr.mxu0 %v308
      %453 = vmatpush1.msra.mxu0 %v307
      %454 = vmatprep.subr.mxu0 %v312
      %455 = vmatpush1.msra.mxu0 %v311
      %456 = vmatprep.subr.mxu0 %v316
      %457 = vmatpush1.msra.mxu0 %v315
      %458 = vmatprep.mubr.f32.mxu0 %v186
      %459 = vmatmul.mubr.f32.gmra.mrb[0].mxu0 %v185
      %v460 = vpop.f32.mrb[0].mxu0
      %v461 = vadd.f32 0.0, %v460
      %v462 = vpop.f32.mrb[0].mxu0
      %v463 = vadd.f32 0.0, %v462
      %464 = vmatprep.mubr.f32.mxu0 %v188
      %465 = vmatmul.mubr.f32.gmra.mrb[0].mxu0 %v187
      %v466 = vpop.f32.mrb[0].mxu0
      %v467 = vadd.f32 0.0, %v466
      %v468 = vpop.f32.mrb[0].mxu0
      %v469 = vadd.f32 0.0, %v468
      %470 = vdwg.mxu0
      %v471 = vadd.f32 %v384, %v390
      %v472 = vrot.slane %v471, 4
      %v473 = vadd.f32 %v471, %v472
      %v474 = vrot.slane %v473, 2
      %v475 = vadd.f32 %v473, %v474
      %v476 = vrot.slane %v475, 1
      %v477 = vadd.f32 %v475, %v476
      %v478 = vadd.f32 %v386, %v392
      %v479 = vrot.slane %v478, 4
      %v480 = vadd.f32 %v478, %v479
      %v481 = vrot.slane %v480, 2
      %v482 = vadd.f32 %v480, %v481
      %v483 = vrot.slane %v482, 1
      %v484 = vadd.f32 %v482, %v483
      %v485 = vadd.f32 %v461, %v467
      %v486 = vrot.slane %v485, 4
      %v487 = vadd.f32 %v485, %v486
      %v488 = vrot.slane %v487, 2
      %v489 = vadd.f32 %v487, %v488
      %v490 = vrot.slane %v489, 1
      %v491 = vadd.f32 %v489, %v490
      %v492 = vadd.f32 %v463, %v469
      %v493 = vrot.slane %v492, 4
      %v494 = vadd.f32 %v492, %v493
      %v495 = vrot.slane %v494, 2
      %v496 = vadd.f32 %v494, %v495
      %v497 = vrot.slane %v496, 1
      %v498 = vadd.f32 %v496, %v497
      %v503 = vcombine.low %v477, %v484
      %v504 = vcombine.low %v491, %v498
      %v506 = vunpack.c.l.s4 1966171168
      %v507 = vunpack.c.0.s8 %v506
      %v508 = vlaneseq
      %v509 = vshrl.u32 %v508, 7
      %v510 = vsub.s32 %v507, %v509
      %v511 = vrot.slane %v503, %v510
      %v513 = vunpack.c.l.s4 1966171168
      %v514 = vunpack.c.0.s8 %v513
      %v515 = vlaneseq
      %v516 = vshrl.u32 %v515, 7
      %v517 = vsub.s32 %v514, %v516
      %v518 = vrot.slane %v504, %v517
      %v519 = vcombine.low %v511, %v518
      %v521 = vunpack.c.l.s4 1966171168
      %v522 = vunpack.c.0.s8 %v521
      %v523 = vlaneseq
      %v524 = vshrl.u32 %v523, 7
      %v525 = vsub.s32 %v522, %v524
      %v526 = vrot.slane %v519, %v525
      %v528 = vlaneseq
      %vm529 = vcmp.ge.s32.totalorder %v528, 0
      %vm530 = vcmp.lt.s32.totalorder %v528, 512
      %vm531 = vmand %vm529, %vm530
      %532 = vst.msk [vmem:[%s184] ss:$8 sm:$0xf] %vm531, %v526
      %533 = vst.msk [vmem:[%s184] ss:$8 sm:$0x0] %vm531, %v526
      %v534 = vmul.f32 %v384, %v384
      %v535 = vmul.f32 %v386, %v386
      %v536 = vmul.f32 %v461, %v461
      %v537 = vmul.f32 %v463, %v463
      %v538 = vmul.f32 %v390, %v390
      %v539 = vmul.f32 %v392, %v392
      %v540 = vmul.f32 %v467, %v467
      %v541 = vmul.f32 %v469, %v469
      %v542 = vadd.f32 %v534, %v538
      %v543 = vrot.slane %v542, 4
      %v544 = vadd.f32 %v542, %v543
      %v545 = vrot.slane %v544, 2
      %v546 = vadd.f32 %v544, %v545
      %v547 = vrot.slane %v546, 1
      %v548 = vadd.f32 %v546, %v547
      %v549 = vadd.f32 %v535, %v539
      %v550 = vrot.slane %v549, 4
      %v551 = vadd.f32 %v549, %v550
      %v552 = vrot.slane %v551, 2
      %v553 = vadd.f32 %v551, %v552
      %v554 = vrot.slane %v553, 1
      %v555 = vadd.f32 %v553, %v554
      %v556 = vadd.f32 %v536, %v540
      %v557 = vrot.slane %v556, 4
      %v558 = vadd.f32 %v556, %v557
      %v559 = vrot.slane %v558, 2
      %v560 = vadd.f32 %v558, %v559
      %v561 = vrot.slane %v560, 1
      %v562 = vadd.f32 %v560, %v561
      %v563 = vadd.f32 %v537, %v541
      %v564 = vrot.slane %v563, 4
      %v565 = vadd.f32 %v563, %v564
      %v566 = vrot.slane %v565, 2
      %v567 = vadd.f32 %v565, %v566
      %v568 = vrot.slane %v567, 1
      %v569 = vadd.f32 %v567, %v568
      %v574 = vcombine.low %v548, %v555
      %v575 = vcombine.low %v562, %v569
      %v577 = vunpack.c.l.s4 1966171168
      %v578 = vunpack.c.0.s8 %v577
      %v579 = vlaneseq
      %v580 = vshrl.u32 %v579, 7
      %v581 = vsub.s32 %v578, %v580
      %v582 = vrot.slane %v574, %v581
      %v584 = vunpack.c.l.s4 1966171168
      %v585 = vunpack.c.0.s8 %v584
      %v586 = vlaneseq
      %v587 = vshrl.u32 %v586, 7
      %v588 = vsub.s32 %v585, %v587
      %v589 = vrot.slane %v575, %v588
      %v590 = vcombine.low %v582, %v589
      %v592 = vunpack.c.l.s4 1966171168
      %v593 = vunpack.c.0.s8 %v592
      %v594 = vlaneseq
      %v595 = vshrl.u32 %v594, 7
      %v596 = vsub.s32 %v593, %v595
      %v597 = vrot.slane %v590, %v596
      %s599 = scalar_lea.vmem %s184, 1
      %600 = vst.msk [vmem:[%s599] ss:$8 sm:$0xf] %vm531, %v597
      %601 = vst.msk [vmem:[%s599] ss:$8 sm:$0x0] %vm531, %v597
      %p602 = scmp.lt.s32.totalorder %s18, 0
      %s603 = scalar_select %p602, %s18, 0
      %p604 = scmp.lt.s32.totalorder %s17, 1
      %s605 = scalar_select %p604, %s17, 1
      %s606 = smul.addr %s605, 4
      %s607 = smul.addr %s603, 8
      %s608 = sadd.s32 %s606, %s607
      %s609 = smul.addr %s608, 8
      %s610 = scalar_lea.vmem %s2, %s609
      // Predicated region
      $region29: #{upsamplerB_forward.2} parent=27 // pred_check
        %p611 = pneg %p94
      $region30: #{upsamplerB_forward.2} parent=27 // pred_check_branch
        %613 = sbr.rel (%p611) target = $region32
      $region31: #{upsamplerB_forward.2} parent=27 // pred_region
        _
      $region32: #{upsamplerB_forward.2} parent=27 // pred_fallthru
        _
    $region28: #{upsamplerB_forward.2} parent=5 // pred_fallthru
      _
    %p614 = scmp.le.s32.totalorder 2, %s8
    // Predicated region
    $region33: #{upsamplerB_forward.2} parent=5 // pred_check
      %p615 = pneg %p614
    $region34: #{upsamplerB_forward.2} parent=5 // pred_check_branch
      %617 = sbr.rel (%p615) target = $region36
    $region35: #{upsamplerB_forward.2} parent=5 // pred_region
      %s618 = ssub.s32 %s8, 2
      // Predicated region
      $region37: #{upsamplerB_forward.2} parent=35 // pred_check
        %p619 = pneg %p100
      $region38: #{upsamplerB_forward.2} parent=35 // pred_check_branch
        %621 = sbr.rel (%p619) target = $region40
      $region39: #{upsamplerB_forward.2} parent=35 // pred_region
        %p622 = scmp.lt.s32.totalorder %s20, 0
        %s623 = scalar_select %p622, %s20, 0
        %p624 = scmp.lt.s32.totalorder %s19, 1
        %s625 = scalar_select %p624, %s19, 1
        %s626 = smul.addr %s625, 4
        %s627 = smul.addr %s623, 8
        %s628 = sadd.s32 %s626, %s627
        %s629 = smul.addr %s628, 8
        %s630 = scalar_lea.vmem %s2, %s629
      $region40: #{upsamplerB_forward.2} parent=35 // pred_fallthru
        _
    $region36: #{upsamplerB_forward.2} parent=5 // pred_fallthru
      _
  $region6: #{upsamplerB_forward.2} parent=0 // loop_footer
    %s12 = sadd.s32 1, %s8
  $region7: #{upsamplerB_forward.2} parent=0 // loop_footer_branch
    %7 = sbr.rel target = $region3
  $region8: #{upsamplerB_forward.2} parent=0 // loop_exit
    _

// kernel: upsamplerB_forward.3
$region0: #{upsamplerB_forward.3}
  #allocation0 [shape = 'u32[]', space=smem, size = 0x4, offset = 0x4, fixed_abs, tag = 'smem constant byte address 0x4 - core index']
  #allocation1 [shape = 'u32[144,128]{1,0:T(1,128)}', space=vmem, size = 0x12000, scoped, tag = 'internal scratch']
  %s0 = inlined_call_operand.vmem [shape: f32[1,32,256], index: 0, kind: input, shape index: {}]
  %s1 = inlined_call_operand.vmem [shape: f32[256,512], index: 1, kind: input, shape index: {}]
  %s2 = inlined_call_operand.vmem [shape: f32[1,512], index: 2, kind: input, shape index: {}]
  %s3 = inlined_call_operand.vmem [shape: f32[1,512], index: 3, kind: input, shape index: {}]
  %s4 = inlined_call_operand.vmem [shape: f32[1,32,512], index: 4, kind: output, shape index: {}]
  %s5 = sld [smem:[#allocation0]]
  $region49: #{upsamplerB_forward.3} parent=0
    _
  %s7 = ssub.s32 1, %s5
  %s8 = scalar_select 0, %s7, %s5
  loop: start=0, step=1, limit=4
  $region2: #{upsamplerB_forward.3} parent=0 // loop_pre_header
    _
  $region3: #{upsamplerB_forward.3} parent=0 // loop_header
    %s10 = sphi 0, %s14
    %p11 = scmp.ge.s32.totalorder %s10, 4
    %s17 = sphi 0, %s29
    %s18 = sphi 0, %s25
    %s19 = sphi 0, %s17
    %s20 = sphi 0, %s18
    %s21 = sphi 0, %s19
    %s22 = sphi 0, %s20
    %s34 = sphi 0, %s36
    %s37 = sphi 0, %s34
    %s38 = sphi 0, %s37
    %s54 = sphi 0, %s38
    %s58 = sphi 0, %s58
    %s60 = sphi 0, %s58
    %s61 = sphi 0, %s60
    %s75 = sphi 0, %s61
    %s79 = sphi 0, %s79
    %s81 = sphi 0, %s79
    %s82 = sphi 0, %s81
    %s96 = sphi 0, %s82
    %s100 = sphi 0, %s100
    %s102 = sphi 0, %s100
    %s103 = sphi 0, %s102
    %s117 = sphi 0, %s103
    %s125 = sphi 0, %s127
    %s128 = sphi 0, %s125
    %s129 = sphi 0, %s128
    %s145 = sphi 0, %s129
  $region4: #{upsamplerB_forward.3} parent=0 // loop_header_branch
    %13 = sbr.rel (%p11) target = $region8
  $region5: #{upsamplerB_forward.3} parent=0 // loop_body
    %s15 = ssub.s32 %s10, 1
    %s16 = ssub.s32 %s10, 2
    %s23 = sadd.s32 1, %s18
    %p24 = scmp.ge.s32.totalorder %s23, 1
    %s25 = scalar_select %p24, 0, %s23
    %s26 = sadd.s32 1, %s17
    %s27 = scalar_select %p24, %s26, %s17
    %p28 = scmp.ge.s32.totalorder %s27, 2
    %s29 = scalar_select %p28, 0, %s27
    %s30 = ssub.s32 %s18, %s25
    %s31 = ssub.s32 %s17, %s29
    %s32 = sor.u32 %s30, %s31
    %p33 = scmp.eq.s32.totalorder %s32, 0
    %s35 = sadd.s32 %s34, 1
    %s36 = scalar_select %p33, %s34, %s35
    %p39 = pneg %p33
    %p40 = scmp.eq.s32.totalorder %s10, 1
    %p41 = por %p39, %p40
    %p42 = scmp.ne.s32.totalorder %s34, %s37
    %p43 = scmp.eq.s32.totalorder %s10, 0
    %p44 = por %p42, %p43
    %p45 = scmp.ne.s32.totalorder %s34, %s37
    %p46 = scmp.eq.s32.totalorder %s15, 1
    %p47 = por %p45, %p46
    %p48 = scmp.ne.s32.totalorder %s37, %s38
    %p49 = scmp.eq.s32.totalorder %s15, 0
    %p50 = por %p48, %p49
    %p51 = scmp.ne.s32.totalorder %s37, %s38
    %p52 = scmp.eq.s32.totalorder %s16, 1
    %p53 = por %p51, %p52
    %p55 = scmp.ne.s32.totalorder %s38, %s54
    %p56 = scmp.eq.s32.totalorder %s16, 0
    %p57 = por %p55, %p56
    %s59 = sadd.s32 %s58, 1
    %p62 = scmp.eq.s32.totalorder %s10, 1
    %p63 = scmp.ne.s32.totalorder %s58, %s60
    %p64 = scmp.eq.s32.totalorder %s10, 0
    %p65 = por %p63, %p64
    %p66 = scmp.ne.s32.totalorder %s58, %s60
    %p67 = scmp.eq.s32.totalorder %s15, 1
    %p68 = por %p66, %p67
    %p69 = scmp.ne.s32.totalorder %s60, %s61
    %p70 = scmp.eq.s32.totalorder %s15, 0
    %p71 = por %p69, %p70
    %p72 = scmp.ne.s32.totalorder %s60, %s61
    %p73 = scmp.eq.s32.totalorder %s16, 1
    %p74 = por %p72, %p73
    %p76 = scmp.ne.s32.totalorder %s61, %s75
    %p77 = scmp.eq.s32.totalorder %s16, 0
    %p78 = por %p76, %p77
    %s80 = sadd.s32 %s79, 1
    %p83 = scmp.eq.s32.totalorder %s10, 1
    %p84 = scmp.ne.s32.totalorder %s79, %s81
    %p85 = scmp.eq.s32.totalorder %s10, 0
    %p86 = por %p84, %p85
    %p87 = scmp.ne.s32.totalorder %s79, %s81
    %p88 = scmp.eq.s32.totalorder %s15, 1
    %p89 = por %p87, %p88
    %p90 = scmp.ne.s32.totalorder %s81, %s82
    %p91 = scmp.eq.s32.totalorder %s15, 0
    %p92 = por %p90, %p91
    %p93 = scmp.ne.s32.totalorder %s81, %s82
    %p94 = scmp.eq.s32.totalorder %s16, 1
    %p95 = por %p93, %p94
    %p97 = scmp.ne.s32.totalorder %s82, %s96
    %p98 = scmp.eq.s32.totalorder %s16, 0
    %p99 = por %p97, %p98
    %s101 = sadd.s32 %s100, 1
    %p104 = scmp.eq.s32.totalorder %s10, 1
    %p105 = scmp.ne.s32.totalorder %s100, %s102
    %p106 = scmp.eq.s32.totalorder %s10, 0
    %p107 = por %p105, %p106
    %p108 = scmp.ne.s32.totalorder %s100, %s102
    %p109 = scmp.eq.s32.totalorder %s15, 1
    %p110 = por %p108, %p109
    %p111 = scmp.ne.s32.totalorder %s102, %s103
    %p112 = scmp.eq.s32.totalorder %s15, 0
    %p113 = por %p111, %p112
    %p114 = scmp.ne.s32.totalorder %s102, %s103
    %p115 = scmp.eq.s32.totalorder %s16, 1
    %p116 = por %p114, %p115
    %p118 = scmp.ne.s32.totalorder %s103, %s117
    %p119 = scmp.eq.s32.totalorder %s16, 0
    %p120 = por %p118, %p119
    %s121 = ssub.s32 %s18, %s25
    %s122 = ssub.s32 %s17, %s29
    %s123 = sor.u32 %s121, %s122
    %p124 = scmp.eq.s32.totalorder %s123, 0
    %s126 = sadd.s32 %s125, 1
    %s127 = scalar_select %p124, %s125, %s126
    %p130 = pneg %p124
    %p131 = scmp.eq.s32.totalorder %s10, 1
    %p132 = por %p130, %p131
    %p133 = scmp.ne.s32.totalorder %s125, %s128
    %p134 = scmp.eq.s32.totalorder %s10, 0
    %p135 = por %p133, %p134
    %p136 = scmp.ne.s32.totalorder %s125, %s128
    %p137 = scmp.eq.s32.totalorder %s15, 1
    %p138 = por %p136, %p137
    %p139 = scmp.ne.s32.totalorder %s128, %s129
    %p140 = scmp.eq.s32.totalorder %s15, 0
    %p141 = por %p139, %p140
    %p142 = scmp.ne.s32.totalorder %s128, %s129
    %p143 = scmp.eq.s32.totalorder %s16, 1
    %p144 = por %p142, %p143
    %p146 = scmp.ne.s32.totalorder %s129, %s145
    %p147 = scmp.eq.s32.totalorder %s16, 0
    %p148 = por %p146, %p147
    %p149 = scmp.le.s32.totalorder 1, %s10
    %p150 = scmp.lt.s32.totalorder %s10, 3
    %p151 = pnand %p149, %p150
    %p152 = pneg %p151
    // Predicated region
    $region9: #{upsamplerB_forward.3} parent=5 // pred_check
      _
    $region10: #{upsamplerB_forward.3} parent=5 // pred_check_branch
      %154 = sbr.rel (%p151) target = $region12
    $region11: #{upsamplerB_forward.3} parent=5 // pred_region
      %s155 = ssub.s32 %s10, 1
      // Predicated region
      $region13: #{upsamplerB_forward.3} parent=11 // pred_check
        %p156 = pneg %p71
      $region14: #{upsamplerB_forward.3} parent=11 // pred_check_branch
        %158 = sbr.rel (%p156) target = $region16
      $region15: #{upsamplerB_forward.3} parent=11 // pred_region
        _
      $region16: #{upsamplerB_forward.3} parent=11 // pred_fallthru
        _
      // Predicated region
      $region17: #{upsamplerB_forward.3} parent=11 // pred_check
        %p159 = pneg %p92
      $region18: #{upsamplerB_forward.3} parent=11 // pred_check_branch
        %161 = sbr.rel (%p159) target = $region20
      $region19: #{upsamplerB_forward.3} parent=11 // pred_region
        _
      $region20: #{upsamplerB_forward.3} parent=11 // pred_fallthru
        _
      // Predicated region
      $region21: #{upsamplerB_forward.3} parent=11 // pred_check
        %p162 = pneg %p113
      $region22: #{upsamplerB_forward.3} parent=11 // pred_check_branch
        %164 = sbr.rel (%p162) target = $region24
      $region23: #{upsamplerB_forward.3} parent=11 // pred_region
        _
      $region24: #{upsamplerB_forward.3} parent=11 // pred_fallthru
        _
    $region12: #{upsamplerB_forward.3} parent=5 // pred_fallthru
      _
    %p165 = scmp.lt.s32.totalorder %s10, 2
    // Predicated region
    $region25: #{upsamplerB_forward.3} parent=5 // pred_check
      %p166 = pneg %p165
    $region26: #{upsamplerB_forward.3} parent=5 // pred_check_branch
      %168 = sbr.rel (%p166) target = $region28
    $region27: #{upsamplerB_forward.3} parent=5 // pred_region
      // Predicated region
      $region29: #{upsamplerB_forward.3} parent=27 // pred_check
        %p169 = pneg %p44
      $region30: #{upsamplerB_forward.3} parent=27 // pred_check_branch
        %171 = sbr.rel (%p169) target = $region32
      $region31: #{upsamplerB_forward.3} parent=27 // pred_region
        %s172 = smul.u32 2, %s17
        %p173 = scmp.lt.s32.totalorder %s18, 0
        %s174 = scalar_select %p173, %s18, 0
        %p175 = scmp.lt.s32.totalorder %s172, 3
        %s176 = scalar_select %p175, %s172, 3
        %s177 = smul.addr %s176, 2
        %s178 = smul.addr %s174, 8
        %s179 = sadd.s32 %s177, %s178
        %s180 = smul.addr %s179, 8
        %s181 = scalar_lea.vmem %s0, %s180
        %s182 = smul.u32 2, %s17
      $region32: #{upsamplerB_forward.3} parent=27 // pred_fallthru
        _
    $region28: #{upsamplerB_forward.3} parent=5 // pred_fallthru
      _
    %p183 = scmp.le.s32.totalorder 1, %s10
    %p184 = scmp.lt.s32.totalorder %s10, 3
    %p185 = pnand %p183, %p184
    %p186 = pneg %p185
    // Predicated region
    $region33: #{upsamplerB_forward.3} parent=5 // pred_check
      _
    $region34: #{upsamplerB_forward.3} parent=5 // pred_check_branch
      %188 = sbr.rel (%p185) target = $region36
    $region35: #{upsamplerB_forward.3} parent=5 // pred_region
      %s189 = ssub.s32 %s10, 1
      %s190 = smul.u32 2, %s19
      %p191 = scmp.lt.s32.totalorder %s20, 0
      %s192 = scalar_select %p191, %s20, 0
      %p193 = scmp.lt.s32.totalorder %s190, 3
      %s194 = scalar_select %p193, %s190, 3
      %s195 = smul.addr %s194, 2
      %s196 = smul.addr %s192, 8
      %s197 = sadd.s32 %s195, %s196
      %s198 = smul.addr %s197, 8
      %s199 = scalar_lea.vmem %s0, %s198
      %p200 = pneg %p50
      %p201 = pneg %p47
      %p202 = pneg %p71
      %p203 = pneg %p68
      %p204 = pneg %p92
      %p205 = pneg %p89
      %p206 = pneg %p113
      %p207 = pneg %p110
      %p208 = pneg %p141
      %p209 = pneg %p138
      %s210 = smul.u32 2, %s19
      %p211 = scmp.lt.s32.totalorder %s20, 0
      %s212 = scalar_select %p211, %s20, 0
      %p213 = scmp.lt.s32.totalorder %s210, 3
      %s214 = scalar_select %p213, %s210, 3
      %s215 = smul.addr %s214, 4
      %s216 = smul.addr %s212, 16
      %s217 = sadd.s32 %s215, %s216
      %s218 = smul.addr %s217, 8
      %s219 = scalar_lea.vmem %s4, %s218
      %s220 = smul.u32 2, %s19
      %p221 = scmp.lt.s32.totalorder %s20, 0
      %s222 = scalar_select %p221, %s20, 0
      %p223 = scmp.lt.s32.totalorder %s220, 3
      %s224 = scalar_select %p223, %s220, 3
      %s225 = smul.addr %s224, 2
      %s226 = smul.addr %s222, 8
      %s227 = sadd.s32 %s225, %s226
      %s228 = smul.addr %s227, 8
      %s229 = scalar_lea.vmem %s0, %s228
      %s230 = smul.u32 2, %s19
      %s231 = smul.u32 2, %s19
      %p232 = scmp.lt.s32.totalorder %s20, 0
      %s233 = scalar_select %p232, %s20, 0
      %p234 = scmp.lt.s32.totalorder %s231, 3
      %s235 = scalar_select %p234, %s231, 3
      %s236 = smul.addr %s235, 4
      %s237 = smul.addr %s233, 16
      %s238 = sadd.s32 %s236, %s237
      %s239 = smul.addr %s238, 8
      %s240 = scalar_lea.vmem %s4, %s239
      %s241 = smul.u32 2, %s19
      %v242 = vld [vmem:[%s229] sm:$0xff]
      %v243 = vld [vmem:[%s229 + $0x8] sm:$0xff]
      %v244 = vld [vmem:[%s229 + $0x10] sm:$0xff]
      %v245 = vld [vmem:[%s229 + $0x18] sm:$0xff]
      %v246 = vld [vmem:[%s1] sm:$0xff]
      %v247 = vld [vmem:[%s1 + $0x8] sm:$0xff]
      %v248 = vld [vmem:[%s1 + $0x10] sm:$0xff]
      %v249 = vld [vmem:[%s1 + $0x18] sm:$0xff]
      %v250 = vld [vmem:[%s1 + $0x20] sm:$0xff]
      %v251 = vld [vmem:[%s1 + $0x28] sm:$0xff]
      %v252 = vld [vmem:[%s1 + $0x30] sm:$0xff]
      %v253 = vld [vmem:[%s1 + $0x38] sm:$0xff]
      %v254 = vld [vmem:[%s1 + $0x40] sm:$0xff]
      %v255 = vld [vmem:[%s1 + $0x48] sm:$0xff]
      %v256 = vld [vmem:[%s1 + $0x50] sm:$0xff]
      %v257 = vld [vmem:[%s1 + $0x58] sm:$0xff]
      %v258 = vld [vmem:[%s1 + $0x60] sm:$0xff]
      %v259 = vld [vmem:[%s1 + $0x68] sm:$0xff]
      %v260 = vld [vmem:[%s1 + $0x70] sm:$0xff]
      %v261 = vld [vmem:[%s1 + $0x78] sm:$0xff]
      %v262 = vld [vmem:[%s1 + $0x80] sm:$0xff]
      %v263 = vld [vmem:[%s1 + $0x88] sm:$0xff]
      %v264 = vld [vmem:[%s1 + $0x90] sm:$0xff]
      %v265 = vld [vmem:[%s1 + $0x98] sm:$0xff]
      %v266 = vld [vmem:[%s1 + $0xa0] sm:$0xff]
      %v267 = vld [vmem:[%s1 + $0xa8] sm:$0xff]
      %v268 = vld [vmem:[%s1 + $0xb0] sm:$0xff]
      %v269 = vld [vmem:[%s1 + $0xb8] sm:$0xff]
      %v270 = vld [vmem:[%s1 + $0xc0] sm:$0xff]
      %v271 = vld [vmem:[%s1 + $0xc8] sm:$0xff]
      %v272 = vld [vmem:[%s1 + $0xd0] sm:$0xff]
      %v273 = vld [vmem:[%s1 + $0xd8] sm:$0xff]
      %v274 = vld [vmem:[%s1 + $0xe0] sm:$0xff]
      %v275 = vld [vmem:[%s1 + $0xe8] sm:$0xff]
      %v276 = vld [vmem:[%s1 + $0xf0] sm:$0xff]
      %v277 = vld [vmem:[%s1 + $0xf8] sm:$0xff]
      %v278 = vld [vmem:[%s1 + $0x100] sm:$0xff]
      %v279 = vld [vmem:[%s1 + $0x108] sm:$0xff]
      %v280 = vld [vmem:[%s1 + $0x110] sm:$0xff]
      %v281 = vld [vmem:[%s1 + $0x118] sm:$0xff]
      %v282 = vld [vmem:[%s1 + $0x120] sm:$0xff]
      %v283 = vld [vmem:[%s1 + $0x128] sm:$0xff]
      %v284 = vld [vmem:[%s1 + $0x130] sm:$0xff]
      %v285 = vld [vmem:[%s1 + $0x138] sm:$0xff]
      %v286 = vld [vmem:[%s1 + $0x140] sm:$0xff]
      %v287 = vld [vmem:[%s1 + $0x148] sm:$0xff]
      %v288 = vld [vmem:[%s1 + $0x150] sm:$0xff]
      %v289 = vld [vmem:[%s1 + $0x158] sm:$0xff]
      %v290 = vld [vmem:[%s1 + $0x160] sm:$0xff]
      %v291 = vld [vmem:[%s1 + $0x168] sm:$0xff]
      %v292 = vld [vmem:[%s1 + $0x170] sm:$0xff]
      %v293 = vld [vmem:[%s1 + $0x178] sm:$0xff]
      %v294 = vld [vmem:[%s1 + $0x180] sm:$0xff]
      %v295 = vld [vmem:[%s1 + $0x188] sm:$0xff]
      %v296 = vld [vmem:[%s1 + $0x190] sm:$0xff]
      %v297 = vld [vmem:[%s1 + $0x198] sm:$0xff]
      %v298 = vld [vmem:[%s1 + $0x1a0] sm:$0xff]
      %v299 = vld [vmem:[%s1 + $0x1a8] sm:$0xff]
      %v300 = vld [vmem:[%s1 + $0x1b0] sm:$0xff]
      %v301 = vld [vmem:[%s1 + $0x1b8] sm:$0xff]
      %v302 = vld [vmem:[%s1 + $0x1c0] sm:$0xff]
      %v303 = vld [vmem:[%s1 + $0x1c8] sm:$0xff]
      %v304 = vld [vmem:[%s1 + $0x1d0] sm:$0xff]
      %v305 = vld [vmem:[%s1 + $0x1d8] sm:$0xff]
      %v306 = vld [vmem:[%s1 + $0x1e0] sm:$0xff]
      %v307 = vld [vmem:[%s1 + $0x1e8] sm:$0xff]
      %v308 = vld [vmem:[%s1 + $0x1f0] sm:$0xff]
      %v309 = vld [vmem:[%s1 + $0x1f8] sm:$0xff]
      %v310 = vld [vmem:[%s1 + $0x200] sm:$0xff]
      %v311 = vld [vmem:[%s1 + $0x208] sm:$0xff]
      %v312 = vld [vmem:[%s1 + $0x210] sm:$0xff]
      %v313 = vld [vmem:[%s1 + $0x218] sm:$0xff]
      %v314 = vld [vmem:[%s1 + $0x220] sm:$0xff]
      %v315 = vld [vmem:[%s1 + $0x228] sm:$0xff]
      %v316 = vld [vmem:[%s1 + $0x230] sm:$0xff]
      %v317 = vld [vmem:[%s1 + $0x238] sm:$0xff]
      %v318 = vld [vmem:[%s1 + $0x240] sm:$0xff]
      %v319 = vld [vmem:[%s1 + $0x248] sm:$0xff]
      %v320 = vld [vmem:[%s1 + $0x250] sm:$0xff]
      %v321 = vld [vmem:[%s1 + $0x258] sm:$0xff]
      %v322 = vld [vmem:[%s1 + $0x260] sm:$0xff]
      %v323 = vld [vmem:[%s1 + $0x268] sm:$0xff]
      %v324 = vld [vmem:[%s1 + $0x270] sm:$0xff]
      %v325 = vld [vmem:[%s1 + $0x278] sm:$0xff]
      %v326 = vld [vmem:[%s1 + $0x280] sm:$0xff]
      %v327 = vld [vmem:[%s1 + $0x288] sm:$0xff]
      %v328 = vld [vmem:[%s1 + $0x290] sm:$0xff]
      %v329 = vld [vmem:[%s1 + $0x298] sm:$0xff]
      %v330 = vld [vmem:[%s1 + $0x2a0] sm:$0xff]
      %v331 = vld [vmem:[%s1 + $0x2a8] sm:$0xff]
      %v332 = vld [vmem:[%s1 + $0x2b0] sm:$0xff]
      %v333 = vld [vmem:[%s1 + $0x2b8] sm:$0xff]
      %v334 = vld [vmem:[%s1 + $0x2c0] sm:$0xff]
      %v335 = vld [vmem:[%s1 + $0x2c8] sm:$0xff]
      %v336 = vld [vmem:[%s1 + $0x2d0] sm:$0xff]
      %v337 = vld [vmem:[%s1 + $0x2d8] sm:$0xff]
      %v338 = vld [vmem:[%s1 + $0x2e0] sm:$0xff]
      %v339 = vld [vmem:[%s1 + $0x2e8] sm:$0xff]
      %v340 = vld [vmem:[%s1 + $0x2f0] sm:$0xff]
      %v341 = vld [vmem:[%s1 + $0x2f8] sm:$0xff]
      %v342 = vld [vmem:[%s1 + $0x300] sm:$0xff]
      %v343 = vld [vmem:[%s1 + $0x308] sm:$0xff]
      %v344 = vld [vmem:[%s1 + $0x310] sm:$0xff]
      %v345 = vld [vmem:[%s1 + $0x318] sm:$0xff]
      %v346 = vld [vmem:[%s1 + $0x320] sm:$0xff]
      %v347 = vld [vmem:[%s1 + $0x328] sm:$0xff]
      %v348 = vld [vmem:[%s1 + $0x330] sm:$0xff]
      %v349 = vld [vmem:[%s1 + $0x338] sm:$0xff]
      %v350 = vld [vmem:[%s1 + $0x340] sm:$0xff]
      %v351 = vld [vmem:[%s1 + $0x348] sm:$0xff]
      %v352 = vld [vmem:[%s1 + $0x350] sm:$0xff]
      %v353 = vld [vmem:[%s1 + $0x358] sm:$0xff]
      %v354 = vld [vmem:[%s1 + $0x360] sm:$0xff]
      %v355 = vld [vmem:[%s1 + $0x368] sm:$0xff]
      %v356 = vld [vmem:[%s1 + $0x370] sm:$0xff]
      %v357 = vld [vmem:[%s1 + $0x378] sm:$0xff]
      %v358 = vld [vmem:[%s1 + $0x380] sm:$0xff]
      %v359 = vld [vmem:[%s1 + $0x388] sm:$0xff]
      %v360 = vld [vmem:[%s1 + $0x390] sm:$0xff]
      %v361 = vld [vmem:[%s1 + $0x398] sm:$0xff]
      %v362 = vld [vmem:[%s1 + $0x3a0] sm:$0xff]
      %v363 = vld [vmem:[%s1 + $0x3a8] sm:$0xff]
      %v364 = vld [vmem:[%s1 + $0x3b0] sm:$0xff]
      %v365 = vld [vmem:[%s1 + $0x3b8] sm:$0xff]
      %v366 = vld [vmem:[%s1 + $0x3c0] sm:$0xff]
      %v367 = vld [vmem:[%s1 + $0x3c8] sm:$0xff]
      %v368 = vld [vmem:[%s1 + $0x3d0] sm:$0xff]
      %v369 = vld [vmem:[%s1 + $0x3d8] sm:$0xff]
      %v370 = vld [vmem:[%s1 + $0x3e0] sm:$0xff]
      %v371 = vld [vmem:[%s1 + $0x3e8] sm:$0xff]
      %v372 = vld [vmem:[%s1 + $0x3f0] sm:$0xff]
      %v373 = vld [vmem:[%s1 + $0x3f8] sm:$0xff]
      %374 = vmatprep.subr.mxu0 %v247
      %375 = vmatpush1.msra.mxu0 %v246
      %376 = vmatprep.subr.mxu0 %v251
      %377 = vmatpush1.msra.mxu0 %v250
      %378 = vmatprep.subr.mxu0 %v255
      %379 = vmatpush1.msra.mxu0 %v254
      %380 = vmatprep.subr.mxu0 %v259
      %381 = vmatpush1.msra.mxu0 %v258
      %382 = vmatprep.subr.mxu0 %v263
      %383 = vmatpush1.msra.mxu0 %v262
      %384 = vmatprep.subr.mxu0 %v267
      %385 = vmatpush1.msra.mxu0 %v266
      %386 = vmatprep.subr.mxu0 %v271
      %387 = vmatpush1.msra.mxu0 %v270
      %388 = vmatprep.subr.mxu0 %v275
      %389 = vmatpush1.msra.mxu0 %v274
      %390 = vmatprep.subr.mxu0 %v279
      %391 = vmatpush1.msra.mxu0 %v278
      %392 = vmatprep.subr.mxu0 %v283
      %393 = vmatpush1.msra.mxu0 %v282
      %394 = vmatprep.subr.mxu0 %v287
      %395 = vmatpush1.msra.mxu0 %v286
      %396 = vmatprep.subr.mxu0 %v291
      %397 = vmatpush1.msra.mxu0 %v290
      %398 = vmatprep.subr.mxu0 %v295
      %399 = vmatpush1.msra.mxu0 %v294
      %400 = vmatprep.subr.mxu0 %v299
      %401 = vmatpush1.msra.mxu0 %v298
      %402 = vmatprep.subr.mxu0 %v303
      %403 = vmatpush1.msra.mxu0 %v302
      %404 = vmatprep.subr.mxu0 %v307
      %405 = vmatpush1.msra.mxu0 %v306
      %406 = vmatprep.subr.mxu0 %v311
      %407 = vmatpush1.msra.mxu0 %v310
      %408 = vmatprep.subr.mxu0 %v315
      %409 = vmatpush1.msra.mxu0 %v314
      %410 = vmatprep.subr.mxu0 %v319
      %411 = vmatpush1.msra.mxu0 %v318
      %412 = vmatprep.subr.mxu0 %v323
      %413 = vmatpush1.msra.mxu0 %v322
      %414 = vmatprep.subr.mxu0 %v327
      %415 = vmatpush1.msra.mxu0 %v326
      %416 = vmatprep.subr.mxu0 %v331
      %417 = vmatpush1.msra.mxu0 %v330
      %418 = vmatprep.subr.mxu0 %v335
      %419 = vmatpush1.msra.mxu0 %v334
      %420 = vmatprep.subr.mxu0 %v339
      %421 = vmatpush1.msra.mxu0 %v338
      %422 = vmatprep.subr.mxu0 %v343
      %423 = vmatpush1.msra.mxu0 %v342
      %424 = vmatprep.subr.mxu0 %v347
      %425 = vmatpush1.msra.mxu0 %v346
      %426 = vmatprep.subr.mxu0 %v351
      %427 = vmatpush1.msra.mxu0 %v350
      %428 = vmatprep.subr.mxu0 %v355
      %429 = vmatpush1.msra.mxu0 %v354
      %430 = vmatprep.subr.mxu0 %v359
      %431 = vmatpush1.msra.mxu0 %v358
      %432 = vmatprep.subr.mxu0 %v363
      %433 = vmatpush1.msra.mxu0 %v362
      %434 = vmatprep.subr.mxu0 %v367
      %435 = vmatpush1.msra.mxu0 %v366
      %436 = vmatprep.subr.mxu0 %v371
      %437 = vmatpush1.msra.mxu0 %v370
      %438 = vmatprep.mubr.f32.mxu0 %v243
      %439 = vmatmul.mubr.f32.gmra.mrb[0].mxu0 %v242
      %v440 = vpop.f32.mrb[0].mxu0
      %v441 = vadd.f32 0.0, %v440
      %v442 = vpop.f32.mrb[0].mxu0
      %v443 = vadd.f32 0.0, %v442
      %444 = vmatprep.mubr.f32.mxu0 %v245
      %445 = vmatmul.mubr.f32.gmra.mrb[0].mxu0 %v244
      %v446 = vpop.f32.mrb[0].mxu0
      %v447 = vadd.f32 0.0, %v446
      %v448 = vpop.f32.mrb[0].mxu0
      %v449 = vadd.f32 0.0, %v448
      %450 = vdwg.mxu0
      %451 = vmatprep.subr.mxu0 %v249
      %452 = vmatpush1.msra.mxu0 %v248
      %453 = vmatprep.subr.mxu0 %v253
      %454 = vmatpush1.msra.mxu0 %v252
      %455 = vmatprep.subr.mxu0 %v257
      %456 = vmatpush1.msra.mxu0 %v256
      %457 = vmatprep.subr.mxu0 %v261
      %458 = vmatpush1.msra.mxu0 %v260
      %459 = vmatprep.subr.mxu0 %v265
      %460 = vmatpush1.msra.mxu0 %v264
      %461 = vmatprep.subr.mxu0 %v269
      %462 = vmatpush1.msra.mxu0 %v268
      %463 = vmatprep.subr.mxu0 %v273
      %464 = vmatpush1.msra.mxu0 %v272
      %465 = vmatprep.subr.mxu0 %v277
      %466 = vmatpush1.msra.mxu0 %v276
      %467 = vmatprep.subr.mxu0 %v281
      %468 = vmatpush1.msra.mxu0 %v280
      %469 = vmatprep.subr.mxu0 %v285
      %470 = vmatpush1.msra.mxu0 %v284
      %471 = vmatprep.subr.mxu0 %v289
      %472 = vmatpush1.msra.mxu0 %v288
      %473 = vmatprep.subr.mxu0 %v293
      %474 = vmatpush1.msra.mxu0 %v292
      %475 = vmatprep.subr.mxu0 %v297
      %476 = vmatpush1.msra.mxu0 %v296
      %477 = vmatprep.subr.mxu0 %v301
      %478 = vmatpush1.msra.mxu0 %v300
      %479 = vmatprep.subr.mxu0 %v305
      %480 = vmatpush1.msra.mxu0 %v304
      %481 = vmatprep.subr.mxu0 %v309
      %482 = vmatpush1.msra.mxu0 %v308
      %483 = vmatprep.subr.mxu0 %v313
      %484 = vmatpush1.msra.mxu0 %v312
      %485 = vmatprep.subr.mxu0 %v317
      %486 = vmatpush1.msra.mxu0 %v316
      %487 = vmatprep.subr.mxu0 %v321
      %488 = vmatpush1.msra.mxu0 %v320
      %489 = vmatprep.subr.mxu0 %v325
      %490 = vmatpush1.msra.mxu0 %v324
      %491 = vmatprep.subr.mxu0 %v329
      %492 = vmatpush1.msra.mxu0 %v328
      %493 = vmatprep.subr.mxu0 %v333
      %494 = vmatpush1.msra.mxu0 %v332
      %495 = vmatprep.subr.mxu0 %v337
      %496 = vmatpush1.msra.mxu0 %v336
      %497 = vmatprep.subr.mxu0 %v341
      %498 = vmatpush1.msra.mxu0 %v340
      %499 = vmatprep.subr.mxu0 %v345
      %500 = vmatpush1.msra.mxu0 %v344
      %501 = vmatprep.subr.mxu0 %v349
      %502 = vmatpush1.msra.mxu0 %v348
      %503 = vmatprep.subr.mxu0 %v353
      %504 = vmatpush1.msra.mxu0 %v352
      %505 = vmatprep.subr.mxu0 %v357
      %506 = vmatpush1.msra.mxu0 %v356
      %507 = vmatprep.subr.mxu0 %v361
      %508 = vmatpush1.msra.mxu0 %v360
      %509 = vmatprep.subr.mxu0 %v365
      %510 = vmatpush1.msra.mxu0 %v364
      %511 = vmatprep.subr.mxu0 %v369
      %512 = vmatpush1.msra.mxu0 %v368
      %513 = vmatprep.subr.mxu0 %v373
      %514 = vmatpush1.msra.mxu0 %v372
      %515 = vmatprep.mubr.f32.mxu0 %v243
      %516 = vmatmul.mubr.f32.gmra.mrb[0].mxu0 %v242
      %v517 = vpop.f32.mrb[0].mxu0
      %v518 = vadd.f32 0.0, %v517
      %v519 = vpop.f32.mrb[0].mxu0
      %v520 = vadd.f32 0.0, %v519
      %521 = vmatprep.mubr.f32.mxu0 %v245
      %522 = vmatmul.mubr.f32.gmra.mrb[0].mxu0 %v244
      %v523 = vpop.f32.mrb[0].mxu0
      %v524 = vadd.f32 0.0, %v523
      %v525 = vpop.f32.mrb[0].mxu0
      %v526 = vadd.f32 0.0, %v525
      %527 = vdwg.mxu0
      %v528 = vld [vmem:[%s2] sm:$0xf]
      %v530 = vlaneseq
      %v531 = vshrl.u32 %v530, 7
      %v532 = vsub.s32 0, %v531
      %v533 = vrot.slane %v528, %v532
      %v534 = vlaneseq
      %v535 = vshrl.u32 %v534, 7
      %v536 = vsub.s32 1, %v535
      %v537 = vrot.slane %v528, %v536
      %v538 = vlaneseq
      %v539 = vshrl.u32 %v538, 7
      %v540 = vsub.s32 2, %v539
      %v541 = vrot.slane %v528, %v540
      %v542 = vlaneseq
      %v543 = vshrl.u32 %v542, 7
      %v544 = vsub.s32 3, %v543
      %v545 = vrot.slane %v528, %v544
      %v550 = vmul.f32 %v441, %v533
      %v551 = vmul.f32 %v443, %v537
      %v552 = vmul.f32 %v518, %v541
      %v553 = vmul.f32 %v520, %v545
      %v554 = vmul.f32 %v447, %v533
      %v555 = vmul.f32 %v449, %v537
      %v556 = vmul.f32 %v524, %v541
      %v557 = vmul.f32 %v526, %v545
      %v558 = vld [vmem:[%s3] sm:$0xf]
      %v560 = vlaneseq
      %v561 = vshrl.u32 %v560, 7
      %v562 = vsub.s32 0, %v561
      %v563 = vrot.slane %v558, %v562
      %v564 = vlaneseq
      %v565 = vshrl.u32 %v564, 7
      %v566 = vsub.s32 1, %v565
      %v567 = vrot.slane %v558, %v566
      %v568 = vlaneseq
      %v569 = vshrl.u32 %v568, 7
      %v570 = vsub.s32 2, %v569
      %v571 = vrot.slane %v558, %v570
      %v572 = vlaneseq
      %v573 = vshrl.u32 %v572, 7
      %v574 = vsub.s32 3, %v573
      %v575 = vrot.slane %v558, %v574
      %v580 = vadd.f32 %v550, %v563
      %v581 = vadd.f32 %v551, %v567
      %v582 = vadd.f32 %v552, %v571
      %v583 = vadd.f32 %v553, %v575
      %v584 = vadd.f32 %v554, %v563
      %v585 = vadd.f32 %v555, %v567
      %v586 = vadd.f32 %v556, %v571
      %v587 = vadd.f32 %v557, %v575
      %v588 = vmax.f32 %v580, 0.0
      %v589 = vmax.f32 %v581, 0.0
      %v590 = vmax.f32 %v582, 0.0
      %v591 = vmax.f32 %v583, 0.0
      %v592 = vmax.f32 %v584, 0.0
      %v593 = vmax.f32 %v585, 0.0
      %v594 = vmax.f32 %v586, 0.0
      %v595 = vmax.f32 %v587, 0.0
      %596 = vst [vmem:[%s240] sm:$0xff] %v588
      %597 = vst [vmem:[%s240 + $0x8] sm:$0xff] %v589
      %598 = vst [vmem:[%s240 + $0x10] sm:$0xff] %v590
      %599 = vst [vmem:[%s240 + $0x18] sm:$0xff] %v591
      %600 = vst [vmem:[%s240 + $0x20] sm:$0xff] %v592
      %601 = vst [vmem:[%s240 + $0x28] sm:$0xff] %v593
      %602 = vst [vmem:[%s240 + $0x30] sm:$0xff] %v594
      %603 = vst [vmem:[%s240 + $0x38] sm:$0xff] %v595
      %s604 = smul.u32 2, %s19
      %p605 = scmp.lt.s32.totalorder %s20, 0
      %s606 = scalar_select %p605, %s20, 0
      %p607 = scmp.lt.s32.totalorder %s604, 3
      %s608 = scalar_select %p607, %s604, 3
      %s609 = smul.addr %s608, 4
      %s610 = smul.addr %s606, 16
      %s611 = sadd.s32 %s609, %s610
      %s612 = smul.addr %s611, 8
      %s613 = scalar_lea.vmem %s4, %s612
      // Predicated region
      $region37: #{upsamplerB_forward.3} parent=35 // pred_check
        %p614 = pneg %p138
      $region38: #{upsamplerB_forward.3} parent=35 // pred_check_branch
        %616 = sbr.rel (%p614) target = $region40
      $region39: #{upsamplerB_forward.3} parent=35 // pred_region
        %s617 = smul.u32 2, %s19
      $region40: #{upsamplerB_forward.3} parent=35 // pred_fallthru
        _
    $region36: #{upsamplerB_forward.3} parent=5 // pred_fallthru
      _
    %p618 = scmp.le.s32.totalorder 2, %s10
    // Predicated region
    $region41: #{upsamplerB_forward.3} parent=5 // pred_check
      %p619 = pneg %p618
    $region42: #{upsamplerB_forward.3} parent=5 // pred_check_branch
      %621 = sbr.rel (%p619) target = $region44
    $region43: #{upsamplerB_forward.3} parent=5 // pred_region
      %s622 = ssub.s32 %s10, 2
      // Predicated region
      $region45: #{upsamplerB_forward.3} parent=43 // pred_check
        %p623 = pneg %p144
      $region46: #{upsamplerB_forward.3} parent=43 // pred_check_branch
        %625 = sbr.rel (%p623) target = $region48
      $region47: #{upsamplerB_forward.3} parent=43 // pred_region
        %s626 = smul.u32 2, %s21
        %p627 = scmp.lt.s32.totalorder %s22, 0
        %s628 = scalar_select %p627, %s22, 0
        %p629 = scmp.lt.s32.totalorder %s626, 3
        %s630 = scalar_select %p629, %s626, 3
        %s631 = smul.addr %s630, 4
        %s632 = smul.addr %s628, 16
        %s633 = sadd.s32 %s631, %s632
        %s634 = smul.addr %s633, 8
        %s635 = scalar_lea.vmem %s4, %s634
      $region48: #{upsamplerB_forward.3} parent=43 // pred_fallthru
        _
    $region44: #{upsamplerB_forward.3} parent=5 // pred_fallthru
      _
  $region6: #{upsamplerB_forward.3} parent=0 // loop_footer
    %s14 = sadd.s32 1, %s10
  $region7: #{upsamplerB_forward.3} parent=0 // loop_footer_branch
    %9 = sbr.rel target = $region3
  $region8: #{upsamplerB_forward.3} parent=0 // loop_exit
    _

// kernel: upsamplerB_forward.2
$region0: #{upsamplerB_forward.2}
  #allocation0 [shape = 'u32[]', space=smem, size = 0x4, offset = 0x4, fixed_abs, tag = 'smem constant byte address 0x4 - core index']
  #allocation1 [shape = 'u32[144,128]{1,0:T(1,128)}', space=vmem, size = 0x12000, scoped, tag = 'internal scratch']
  %s0 = inlined_call_operand.vmem [shape: f32[1,32,256], index: 0, kind: input, shape index: {}]
  %s1 = inlined_call_operand.vmem [shape: f32[256,512], index: 1, kind: input, shape index: {}]
  %s2 = inlined_call_operand.vmem [shape: f32[1,16,512], index: 2, kind: output, shape index: {}]
  %s3 = sld [smem:[#allocation0]]
  $region41: #{upsamplerB_forward.2} parent=0
    _
  %s5 = ssub.s32 1, %s3
  %s6 = scalar_select 0, %s5, %s3
  loop: start=0, step=1, limit=4
  $region2: #{upsamplerB_forward.2} parent=0 // loop_pre_header
    _
  $region3: #{upsamplerB_forward.2} parent=0 // loop_header
    %s8 = sphi 0, %s12
    %p9 = scmp.ge.s32.totalorder %s8, 4
    %s15 = sphi 0, %s27
    %s16 = sphi 0, %s23
    %s17 = sphi 0, %s15
    %s18 = sphi 0, %s16
    %s19 = sphi 0, %s17
    %s20 = sphi 0, %s18
    %s32 = sphi 0, %s34
    %s35 = sphi 0, %s32
    %s36 = sphi 0, %s35
    %s52 = sphi 0, %s36
    %s56 = sphi 0, %s56
    %s58 = sphi 0, %s56
    %s59 = sphi 0, %s58
    %s73 = sphi 0, %s59
    %s81 = sphi 0, %s83
    %s84 = sphi 0, %s81
    %s85 = sphi 0, %s84
    %s101 = sphi 0, %s85
  $region4: #{upsamplerB_forward.2} parent=0 // loop_header_branch
    %11 = sbr.rel (%p9) target = $region8
  $region5: #{upsamplerB_forward.2} parent=0 // loop_body
    %s13 = ssub.s32 %s8, 1
    %s14 = ssub.s32 %s8, 2
    %s21 = sadd.s32 1, %s16
    %p22 = scmp.ge.s32.totalorder %s21, 1
    %s23 = scalar_select %p22, 0, %s21
    %s24 = sadd.s32 1, %s15
    %s25 = scalar_select %p22, %s24, %s15
    %p26 = scmp.ge.s32.totalorder %s25, 2
    %s27 = scalar_select %p26, 0, %s25
    %s28 = ssub.s32 %s16, %s23
    %s29 = ssub.s32 %s15, %s27
    %s30 = sor.u32 %s28, %s29
    %p31 = scmp.eq.s32.totalorder %s30, 0
    %s33 = sadd.s32 %s32, 1
    %s34 = scalar_select %p31, %s32, %s33
    %p37 = pneg %p31
    %p38 = scmp.eq.s32.totalorder %s8, 1
    %p39 = por %p37, %p38
    %p40 = scmp.ne.s32.totalorder %s32, %s35
    %p41 = scmp.eq.s32.totalorder %s8, 0
    %p42 = por %p40, %p41
    %p43 = scmp.ne.s32.totalorder %s32, %s35
    %p44 = scmp.eq.s32.totalorder %s13, 1
    %p45 = por %p43, %p44
    %p46 = scmp.ne.s32.totalorder %s35, %s36
    %p47 = scmp.eq.s32.totalorder %s13, 0
    %p48 = por %p46, %p47
    %p49 = scmp.ne.s32.totalorder %s35, %s36
    %p50 = scmp.eq.s32.totalorder %s14, 1
    %p51 = por %p49, %p50
    %p53 = scmp.ne.s32.totalorder %s36, %s52
    %p54 = scmp.eq.s32.totalorder %s14, 0
    %p55 = por %p53, %p54
    %s57 = sadd.s32 %s56, 1
    %p60 = scmp.eq.s32.totalorder %s8, 1
    %p61 = scmp.ne.s32.totalorder %s56, %s58
    %p62 = scmp.eq.s32.totalorder %s8, 0
    %p63 = por %p61, %p62
    %p64 = scmp.ne.s32.totalorder %s56, %s58
    %p65 = scmp.eq.s32.totalorder %s13, 1
    %p66 = por %p64, %p65
    %p67 = scmp.ne.s32.totalorder %s58, %s59
    %p68 = scmp.eq.s32.totalorder %s13, 0
    %p69 = por %p67, %p68
    %p70 = scmp.ne.s32.totalorder %s58, %s59
    %p71 = scmp.eq.s32.totalorder %s14, 1
    %p72 = por %p70, %p71
    %p74 = scmp.ne.s32.totalorder %s59, %s73
    %p75 = scmp.eq.s32.totalorder %s14, 0
    %p76 = por %p74, %p75
    %s77 = ssub.s32 %s16, %s23
    %s78 = ssub.s32 %s15, %s27
    %s79 = sor.u32 %s77, %s78
    %p80 = scmp.eq.s32.totalorder %s79, 0
    %s82 = sadd.s32 %s81, 1
    %s83 = scalar_select %p80, %s81, %s82
    %p86 = pneg %p80
    %p87 = scmp.eq.s32.totalorder %s8, 1
    %p88 = por %p86, %p87
    %p89 = scmp.ne.s32.totalorder %s81, %s84
    %p90 = scmp.eq.s32.totalorder %s8, 0
    %p91 = por %p89, %p90
    %p92 = scmp.ne.s32.totalorder %s81, %s84
    %p93 = scmp.eq.s32.totalorder %s13, 1
    %p94 = por %p92, %p93
    %p95 = scmp.ne.s32.totalorder %s84, %s85
    %p96 = scmp.eq.s32.totalorder %s13, 0
    %p97 = por %p95, %p96
    %p98 = scmp.ne.s32.totalorder %s84, %s85
    %p99 = scmp.eq.s32.totalorder %s14, 1
    %p100 = por %p98, %p99
    %p102 = scmp.ne.s32.totalorder %s85, %s101
    %p103 = scmp.eq.s32.totalorder %s14, 0
    %p104 = por %p102, %p103
    %p105 = scmp.le.s32.totalorder 1, %s8
    %p106 = scmp.lt.s32.totalorder %s8, 3
    %p107 = pnand %p105, %p106
    %p108 = pneg %p107
    // Predicated region
    $region9: #{upsamplerB_forward.2} parent=5 // pred_check
      _
    $region10: #{upsamplerB_forward.2} parent=5 // pred_check_branch
      %110 = sbr.rel (%p107) target = $region12
    $region11: #{upsamplerB_forward.2} parent=5 // pred_region
      %s111 = ssub.s32 %s8, 1
      // Predicated region
      $region13: #{upsamplerB_forward.2} parent=11 // pred_check
        %p112 = pneg %p69
      $region14: #{upsamplerB_forward.2} parent=11 // pred_check_branch
        %114 = sbr.rel (%p112) target = $region16
      $region15: #{upsamplerB_forward.2} parent=11 // pred_region
        _
      $region16: #{upsamplerB_forward.2} parent=11 // pred_fallthru
        _
    $region12: #{upsamplerB_forward.2} parent=5 // pred_fallthru
      _
    %p115 = scmp.lt.s32.totalorder %s8, 2
    // Predicated region
    $region17: #{upsamplerB_forward.2} parent=5 // pred_check
      %p116 = pneg %p115
    $region18: #{upsamplerB_forward.2} parent=5 // pred_check_branch
      %118 = sbr.rel (%p116) target = $region20
    $region19: #{upsamplerB_forward.2} parent=5 // pred_region
      // Predicated region
      $region21: #{upsamplerB_forward.2} parent=19 // pred_check
        %p119 = pneg %p42
      $region22: #{upsamplerB_forward.2} parent=19 // pred_check_branch
        %121 = sbr.rel (%p119) target = $region24
      $region23: #{upsamplerB_forward.2} parent=19 // pred_region
        %s122 = smul.u32 2, %s15
        %p123 = scmp.lt.s32.totalorder %s16, 0
        %s124 = scalar_select %p123, %s16, 0
        %p125 = scmp.lt.s32.totalorder %s122, 3
        %s126 = scalar_select %p125, %s122, 3
        %s127 = smul.addr %s126, 2
        %s128 = smul.addr %s124, 8
        %s129 = sadd.s32 %s127, %s128
        %s130 = smul.addr %s129, 8
        %s131 = scalar_lea.vmem %s0, %s130
        %s132 = smul.u32 2, %s15
      $region24: #{upsamplerB_forward.2} parent=19 // pred_fallthru
        _
    $region20: #{upsamplerB_forward.2} parent=5 // pred_fallthru
      _
    %p133 = scmp.le.s32.totalorder 1, %s8
    %p134 = scmp.lt.s32.totalorder %s8, 3
    %p135 = pnand %p133, %p134
    %p136 = pneg %p135
    // Predicated region
    $region25: #{upsamplerB_forward.2} parent=5 // pred_check
      _
    $region26: #{upsamplerB_forward.2} parent=5 // pred_check_branch
      %138 = sbr.rel (%p135) target = $region28
    $region27: #{upsamplerB_forward.2} parent=5 // pred_region
      %s139 = ssub.s32 %s8, 1
      %s140 = smul.u32 2, %s17
      %p141 = scmp.lt.s32.totalorder %s18, 0
      %s142 = scalar_select %p141, %s18, 0
      %p143 = scmp.lt.s32.totalorder %s140, 3
      %s144 = scalar_select %p143, %s140, 3
      %s145 = smul.addr %s144, 2
      %s146 = smul.addr %s142, 8
      %s147 = sadd.s32 %s145, %s146
      %s148 = smul.addr %s147, 8
      %s149 = scalar_lea.vmem %s0, %s148
      %p150 = pneg %p48
      %p151 = pneg %p45
      %p152 = pneg %p69
      %p153 = pneg %p66
      %p154 = pneg %p97
      %p155 = pneg %p94
      %p156 = scmp.lt.s32.totalorder %s18, 0
      %s157 = scalar_select %p156, %s18, 0
      %p158 = scmp.lt.s32.totalorder %s17, 1
      %s159 = scalar_select %p158, %s17, 1
      %s160 = smul.addr %s159, 4
      %s161 = smul.addr %s157, 8
      %s162 = sadd.s32 %s160, %s161
      %s163 = smul.addr %s162, 8
      %s164 = scalar_lea.vmem %s2, %s163
      %s165 = smul.u32 2, %s17
      %p166 = scmp.lt.s32.totalorder %s18, 0
      %s167 = scalar_select %p166, %s18, 0
      %p168 = scmp.lt.s32.totalorder %s165, 3
      %s169 = scalar_select %p168, %s165, 3
      %s170 = smul.addr %s169, 2
      %s171 = smul.addr %s167, 8
      %s172 = sadd.s32 %s170, %s171
      %s173 = smul.addr %s172, 8
      %s174 = scalar_lea.vmem %s0, %s173
      %s175 = smul.u32 2, %s17
      %p176 = scmp.lt.s32.totalorder %s18, 0
      %s177 = scalar_select %p176, %s18, 0
      %p178 = scmp.lt.s32.totalorder %s17, 1
      %s179 = scalar_select %p178, %s17, 1
      %s180 = smul.addr %s179, 4
      %s181 = smul.addr %s177, 8
      %s182 = sadd.s32 %s180, %s181
      %s183 = smul.addr %s182, 8
      %s184 = scalar_lea.vmem %s2, %s183
      %v185 = vld [vmem:[%s174] sm:$0xff]
      %v186 = vld [vmem:[%s174 + $0x8] sm:$0xff]
      %v187 = vld [vmem:[%s174 + $0x10] sm:$0xff]
      %v188 = vld [vmem:[%s174 + $0x18] sm:$0xff]
      %v189 = vld [vmem:[%s1] sm:$0xff]
      %v190 = vld [vmem:[%s1 + $0x8] sm:$0xff]
      %v191 = vld [vmem:[%s1 + $0x10] sm:$0xff]
      %v192 = vld [vmem:[%s1 + $0x18] sm:$0xff]
      %v193 = vld [vmem:[%s1 + $0x20] sm:$0xff]
      %v194 = vld [vmem:[%s1 + $0x28] sm:$0xff]
      %v195 = vld [vmem:[%s1 + $0x30] sm:$0xff]
      %v196 = vld [vmem:[%s1 + $0x38] sm:$0xff]
      %v197 = vld [vmem:[%s1 + $0x40] sm:$0xff]
      %v198 = vld [vmem:[%s1 + $0x48] sm:$0xff]
      %v199 = vld [vmem:[%s1 + $0x50] sm:$0xff]
      %v200 = vld [vmem:[%s1 + $0x58] sm:$0xff]
      %v201 = vld [vmem:[%s1 + $0x60] sm:$0xff]
      %v202 = vld [vmem:[%s1 + $0x68] sm:$0xff]
      %v203 = vld [vmem:[%s1 + $0x70] sm:$0xff]
      %v204 = vld [vmem:[%s1 + $0x78] sm:$0xff]
      %v205 = vld [vmem:[%s1 + $0x80] sm:$0xff]
      %v206 = vld [vmem:[%s1 + $0x88] sm:$0xff]
      %v207 = vld [vmem:[%s1 + $0x90] sm:$0xff]
      %v208 = vld [vmem:[%s1 + $0x98] sm:$0xff]
      %v209 = vld [vmem:[%s1 + $0xa0] sm:$0xff]
      %v210 = vld [vmem:[%s1 + $0xa8] sm:$0xff]
      %v211 = vld [vmem:[%s1 + $0xb0] sm:$0xff]
      %v212 = vld [vmem:[%s1 + $0xb8] sm:$0xff]
      %v213 = vld [vmem:[%s1 + $0xc0] sm:$0xff]
      %v214 = vld [vmem:[%s1 + $0xc8] sm:$0xff]
      %v215 = vld [vmem:[%s1 + $0xd0] sm:$0xff]
      %v216 = vld [vmem:[%s1 + $0xd8] sm:$0xff]
      %v217 = vld [vmem:[%s1 + $0xe0] sm:$0xff]
      %v218 = vld [vmem:[%s1 + $0xe8] sm:$0xff]
      %v219 = vld [vmem:[%s1 + $0xf0] sm:$0xff]
      %v220 = vld [vmem:[%s1 + $0xf8] sm:$0xff]
      %v221 = vld [vmem:[%s1 + $0x100] sm:$0xff]
      %v222 = vld [vmem:[%s1 + $0x108] sm:$0xff]
      %v223 = vld [vmem:[%s1 + $0x110] sm:$0xff]
      %v224 = vld [vmem:[%s1 + $0x118] sm:$0xff]
      %v225 = vld [vmem:[%s1 + $0x120] sm:$0xff]
      %v226 = vld [vmem:[%s1 + $0x128] sm:$0xff]
      %v227 = vld [vmem:[%s1 + $0x130] sm:$0xff]
      %v228 = vld [vmem:[%s1 + $0x138] sm:$0xff]
      %v229 = vld [vmem:[%s1 + $0x140] sm:$0xff]
      %v230 = vld [vmem:[%s1 + $0x148] sm:$0xff]
      %v231 = vld [vmem:[%s1 + $0x150] sm:$0xff]
      %v232 = vld [vmem:[%s1 + $0x158] sm:$0xff]
      %v233 = vld [vmem:[%s1 + $0x160] sm:$0xff]
      %v234 = vld [vmem:[%s1 + $0x168] sm:$0xff]
      %v235 = vld [vmem:[%s1 + $0x170] sm:$0xff]
      %v236 = vld [vmem:[%s1 + $0x178] sm:$0xff]
      %v237 = vld [vmem:[%s1 + $0x180] sm:$0xff]
      %v238 = vld [vmem:[%s1 + $0x188] sm:$0xff]
      %v239 = vld [vmem:[%s1 + $0x190] sm:$0xff]
      %v240 = vld [vmem:[%s1 + $0x198] sm:$0xff]
      %v241 = vld [vmem:[%s1 + $0x1a0] sm:$0xff]
      %v242 = vld [vmem:[%s1 + $0x1a8] sm:$0xff]
      %v243 = vld [vmem:[%s1 + $0x1b0] sm:$0xff]
      %v244 = vld [vmem:[%s1 + $0x1b8] sm:$0xff]
      %v245 = vld [vmem:[%s1 + $0x1c0] sm:$0xff]
      %v246 = vld [vmem:[%s1 + $0x1c8] sm:$0xff]
      %v247 = vld [vmem:[%s1 + $0x1d0] sm:$0xff]
      %v248 = vld [vmem:[%s1 + $0x1d8] sm:$0xff]
      %v249 = vld [vmem:[%s1 + $0x1e0] sm:$0xff]
      %v250 = vld [vmem:[%s1 + $0x1e8] sm:$0xff]
      %v251 = vld [vmem:[%s1 + $0x1f0] sm:$0xff]
      %v252 = vld [vmem:[%s1 + $0x1f8] sm:$0xff]
      %v253 = vld [vmem:[%s1 + $0x200] sm:$0xff]
      %v254 = vld [vmem:[%s1 + $0x208] sm:$0xff]
      %v255 = vld [vmem:[%s1 + $0x210] sm:$0xff]
      %v256 = vld [vmem:[%s1 + $0x218] sm:$0xff]
      %v257 = vld [vmem:[%s1 + $0x220] sm:$0xff]
      %v258 = vld [vmem:[%s1 + $0x228] sm:$0xff]
      %v259 = vld [vmem:[%s1 + $0x230] sm:$0xff]
      %v260 = vld [vmem:[%s1 + $0x238] sm:$0xff]
      %v261 = vld [vmem:[%s1 + $0x240] sm:$0xff]
      %v262 = vld [vmem:[%s1 + $0x248] sm:$0xff]
      %v263 = vld [vmem:[%s1 + $0x250] sm:$0xff]
      %v264 = vld [vmem:[%s1 + $0x258] sm:$0xff]
      %v265 = vld [vmem:[%s1 + $0x260] sm:$0xff]
      %v266 = vld [vmem:[%s1 + $0x268] sm:$0xff]
      %v267 = vld [vmem:[%s1 + $0x270] sm:$0xff]
      %v268 = vld [vmem:[%s1 + $0x278] sm:$0xff]
      %v269 = vld [vmem:[%s1 + $0x280] sm:$0xff]
      %v270 = vld [vmem:[%s1 + $0x288] sm:$0xff]
      %v271 = vld [vmem:[%s1 + $0x290] sm:$0xff]
      %v272 = vld [vmem:[%s1 + $0x298] sm:$0xff]
      %v273 = vld [vmem:[%s1 + $0x2a0] sm:$0xff]
      %v274 = vld [vmem:[%s1 + $0x2a8] sm:$0xff]
      %v275 = vld [vmem:[%s1 + $0x2b0] sm:$0xff]
      %v276 = vld [vmem:[%s1 + $0x2b8] sm:$0xff]
      %v277 = vld [vmem:[%s1 + $0x2c0] sm:$0xff]
      %v278 = vld [vmem:[%s1 + $0x2c8] sm:$0xff]
      %v279 = vld [vmem:[%s1 + $0x2d0] sm:$0xff]
      %v280 = vld [vmem:[%s1 + $0x2d8] sm:$0xff]
      %v281 = vld [vmem:[%s1 + $0x2e0] sm:$0xff]
      %v282 = vld [vmem:[%s1 + $0x2e8] sm:$0xff]
      %v283 = vld [vmem:[%s1 + $0x2f0] sm:$0xff]
      %v284 = vld [vmem:[%s1 + $0x2f8] sm:$0xff]
      %v285 = vld [vmem:[%s1 + $0x300] sm:$0xff]
      %v286 = vld [vmem:[%s1 + $0x308] sm:$0xff]
      %v287 = vld [vmem:[%s1 + $0x310] sm:$0xff]
      %v288 = vld [vmem:[%s1 + $0x318] sm:$0xff]
      %v289 = vld [vmem:[%s1 + $0x320] sm:$0xff]
      %v290 = vld [vmem:[%s1 + $0x328] sm:$0xff]
      %v291 = vld [vmem:[%s1 + $0x330] sm:$0xff]
      %v292 = vld [vmem:[%s1 + $0x338] sm:$0xff]
      %v293 = vld [vmem:[%s1 + $0x340] sm:$0xff]
      %v294 = vld [vmem:[%s1 + $0x348] sm:$0xff]
      %v295 = vld [vmem:[%s1 + $0x350] sm:$0xff]
      %v296 = vld [vmem:[%s1 + $0x358] sm:$0xff]
      %v297 = vld [vmem:[%s1 + $0x360] sm:$0xff]
      %v298 = vld [vmem:[%s1 + $0x368] sm:$0xff]
      %v299 = vld [vmem:[%s1 + $0x370] sm:$0xff]
      %v300 = vld [vmem:[%s1 + $0x378] sm:$0xff]
      %v301 = vld [vmem:[%s1 + $0x380] sm:$0xff]
      %v302 = vld [vmem:[%s1 + $0x388] sm:$0xff]
      %v303 = vld [vmem:[%s1 + $0x390] sm:$0xff]
      %v304 = vld [vmem:[%s1 + $0x398] sm:$0xff]
      %v305 = vld [vmem:[%s1 + $0x3a0] sm:$0xff]
      %v306 = vld [vmem:[%s1 + $0x3a8] sm:$0xff]
      %v307 = vld [vmem:[%s1 + $0x3b0] sm:$0xff]
      %v308 = vld [vmem:[%s1 + $0x3b8] sm:$0xff]
      %v309 = vld [vmem:[%s1 + $0x3c0] sm:$0xff]
      %v310 = vld [vmem:[%s1 + $0x3c8] sm:$0xff]
      %v311 = vld [vmem:[%s1 + $0x3d0] sm:$0xff]
      %v312 = vld [vmem:[%s1 + $0x3d8] sm:$0xff]
      %v313 = vld [vmem:[%s1 + $0x3e0] sm:$0xff]
      %v314 = vld [vmem:[%s1 + $0x3e8] sm:$0xff]
      %v315 = vld [vmem:[%s1 + $0x3f0] sm:$0xff]
      %v316 = vld [vmem:[%s1 + $0x3f8] sm:$0xff]
      %317 = vmatprep.subr.mxu0 %v190
      %318 = vmatpush1.msra.mxu0 %v189
      %319 = vmatprep.subr.mxu0 %v194
      %320 = vmatpush1.msra.mxu0 %v193
      %321 = vmatprep.subr.mxu0 %v198
      %322 = vmatpush1.msra.mxu0 %v197
      %323 = vmatprep.subr.mxu0 %v202
      %324 = vmatpush1.msra.mxu0 %v201
      %325 = vmatprep.subr.mxu0 %v206
      %326 = vmatpush1.msra.mxu0 %v205
      %327 = vmatprep.subr.mxu0 %v210
      %328 = vmatpush1.msra.mxu0 %v209
      %329 = vmatprep.subr.mxu0 %v214
      %330 = vmatpush1.msra.mxu0 %v213
      %331 = vmatprep.subr.mxu0 %v218
      %332 = vmatpush1.msra.mxu0 %v217
      %333 = vmatprep.subr.mxu0 %v222
      %334 = vmatpush1.msra.mxu0 %v221
      %335 = vmatprep.subr.mxu0 %v226
      %336 = vmatpush1.msra.mxu0 %v225
      %337 = vmatprep.subr.mxu0 %v230
      %338 = vmatpush1.msra.mxu0 %v229
      %339 = vmatprep.subr.mxu0 %v234
      %340 = vmatpush1.msra.mxu0 %v233
      %341 = vmatprep.subr.mxu0 %v238
      %342 = vmatpush1.msra.mxu0 %v237
      %343 = vmatprep.subr.mxu0 %v242
      %344 = vmatpush1.msra.mxu0 %v241
      %345 = vmatprep.subr.mxu0 %v246
      %346 = vmatpush1.msra.mxu0 %v245
      %347 = vmatprep.subr.mxu0 %v250
      %348 = vmatpush1.msra.mxu0 %v249
      %349 = vmatprep.subr.mxu0 %v254
      %350 = vmatpush1.msra.mxu0 %v253
      %351 = vmatprep.subr.mxu0 %v258
      %352 = vmatpush1.msra.mxu0 %v257
      %353 = vmatprep.subr.mxu0 %v262
      %354 = vmatpush1.msra.mxu0 %v261
      %355 = vmatprep.subr.mxu0 %v266
      %356 = vmatpush1.msra.mxu0 %v265
      %357 = vmatprep.subr.mxu0 %v270
      %358 = vmatpush1.msra.mxu0 %v269
      %359 = vmatprep.subr.mxu0 %v274
      %360 = vmatpush1.msra.mxu0 %v273
      %361 = vmatprep.subr.mxu0 %v278
      %362 = vmatpush1.msra.mxu0 %v277
      %363 = vmatprep.subr.mxu0 %v282
      %364 = vmatpush1.msra.mxu0 %v281
      %365 = vmatprep.subr.mxu0 %v286
      %366 = vmatpush1.msra.mxu0 %v285
      %367 = vmatprep.subr.mxu0 %v290
      %368 = vmatpush1.msra.mxu0 %v289
      %369 = vmatprep.subr.mxu0 %v294
      %370 = vmatpush1.msra.mxu0 %v293
      %371 = vmatprep.subr.mxu0 %v298
      %372 = vmatpush1.msra.mxu0 %v297
      %373 = vmatprep.subr.mxu0 %v302
      %374 = vmatpush1.msra.mxu0 %v301
      %375 = vmatprep.subr.mxu0 %v306
      %376 = vmatpush1.msra.mxu0 %v305
      %377 = vmatprep.subr.mxu0 %v310
      %378 = vmatpush1.msra.mxu0 %v309
      %379 = vmatprep.subr.mxu0 %v314
      %380 = vmatpush1.msra.mxu0 %v313
      %381 = vmatprep.mubr.f32.mxu0 %v186
      %382 = vmatmul.mubr.f32.gmra.mrb[0].mxu0 %v185
      %v383 = vpop.f32.mrb[0].mxu0
      %v384 = vadd.f32 0.0, %v383
      %v385 = vpop.f32.mrb[0].mxu0
      %v386 = vadd.f32 0.0, %v385
      %387 = vmatprep.mubr.f32.mxu0 %v188
      %388 = vmatmul.mubr.f32.gmra.mrb[0].mxu0 %v187
      %v389 = vpop.f32.mrb[0].mxu0
      %v390 = vadd.f32 0.0, %v389
      %v391 = vpop.f32.mrb[0].mxu0
      %v392 = vadd.f32 0.0, %v391
      %393 = vdwg.mxu0
      %394 = vmatprep.subr.mxu0 %v192
      %395 = vmatpush1.msra.mxu0 %v191
      %396 = vmatprep.subr.mxu0 %v196
      %397 = vmatpush1.msra.mxu0 %v195
      %398 = vmatprep.subr.mxu0 %v200
      %399 = vmatpush1.msra.mxu0 %v199
      %400 = vmatprep.subr.mxu0 %v204
      %401 = vmatpush1.msra.mxu0 %v203
      %402 = vmatprep.subr.mxu0 %v208
      %403 = vmatpush1.msra.mxu0 %v207
      %404 = vmatprep.subr.mxu0 %v212
      %405 = vmatpush1.msra.mxu0 %v211
      %406 = vmatprep.subr.mxu0 %v216
      %407 = vmatpush1.msra.mxu0 %v215
      %408 = vmatprep.subr.mxu0 %v220
      %409 = vmatpush1.msra.mxu0 %v219
      %410 = vmatprep.subr.mxu0 %v224
      %411 = vmatpush1.msra.mxu0 %v223
      %412 = vmatprep.subr.mxu0 %v228
      %413 = vmatpush1.msra.mxu0 %v227
      %414 = vmatprep.subr.mxu0 %v232
      %415 = vmatpush1.msra.mxu0 %v231
      %416 = vmatprep.subr.mxu0 %v236
      %417 = vmatpush1.msra.mxu0 %v235
      %418 = vmatprep.subr.mxu0 %v240
      %419 = vmatpush1.msra.mxu0 %v239
      %420 = vmatprep.subr.mxu0 %v244
      %421 = vmatpush1.msra.mxu0 %v243
      %422 = vmatprep.subr.mxu0 %v248
      %423 = vmatpush1.msra.mxu0 %v247
      %424 = vmatprep.subr.mxu0 %v252
      %425 = vmatpush1.msra.mxu0 %v251
      %426 = vmatprep.subr.mxu0 %v256
      %427 = vmatpush1.msra.mxu0 %v255
      %428 = vmatprep.subr.mxu0 %v260
      %429 = vmatpush1.msra.mxu0 %v259
      %430 = vmatprep.subr.mxu0 %v264
      %431 = vmatpush1.msra.mxu0 %v263
      %432 = vmatprep.subr.mxu0 %v268
      %433 = vmatpush1.msra.mxu0 %v267
      %434 = vmatprep.subr.mxu0 %v272
      %435 = vmatpush1.msra.mxu0 %v271
      %436 = vmatprep.subr.mxu0 %v276
      %437 = vmatpush1.msra.mxu0 %v275
      %438 = vmatprep.subr.mxu0 %v280
      %439 = vmatpush1.msra.mxu0 %v279
      %440 = vmatprep.subr.mxu0 %v284
      %441 = vmatpush1.msra.mxu0 %v283
      %442 = vmatprep.subr.mxu0 %v288
      %443 = vmatpush1.msra.mxu0 %v287
      %444 = vmatprep.subr.mxu0 %v292
      %445 = vmatpush1.msra.mxu0 %v291
      %446 = vmatprep.subr.mxu0 %v296
      %447 = vmatpush1.msra.mxu0 %v295
      %448 = vmatprep.subr.mxu0 %v300
      %449 = vmatpush1.msra.mxu0 %v299
      %450 = vmatprep.subr.mxu0 %v304
      %451 = vmatpush1.msra.mxu0 %v303
      %452 = vmatprep.subr.mxu0 %v308
      %453 = vmatpush1.msra.mxu0 %v307
      %454 = vmatprep.subr.mxu0 %v312
      %455 = vmatpush1.msra.mxu0 %v311
      %456 = vmatprep.subr.mxu0 %v316
      %457 = vmatpush1.msra.mxu0 %v315
      %458 = vmatprep.mubr.f32.mxu0 %v186
      %459 = vmatmul.mubr.f32.gmra.mrb[0].mxu0 %v185
      %v460 = vpop.f32.mrb[0].mxu0
      %v461 = vadd.f32 0.0, %v460
      %v462 = vpop.f32.mrb[0].mxu0
      %v463 = vadd.f32 0.0, %v462
      %464 = vmatprep.mubr.f32.mxu0 %v188
      %465 = vmatmul.mubr.f32.gmra.mrb[0].mxu0 %v187
      %v466 = vpop.f32.mrb[0].mxu0
      %v467 = vadd.f32 0.0, %v466
      %v468 = vpop.f32.mrb[0].mxu0
      %v469 = vadd.f32 0.0, %v468
      %470 = vdwg.mxu0
      %v471 = vadd.f32 %v384, %v390
      %v472 = vrot.slane %v471, 4
      %v473 = vadd.f32 %v471, %v472
      %v474 = vrot.slane %v473, 2
      %v475 = vadd.f32 %v473, %v474
      %v476 = vrot.slane %v475, 1
      %v477 = vadd.f32 %v475, %v476
      %v478 = vadd.f32 %v386, %v392
      %v479 = vrot.slane %v478, 4
      %v480 = vadd.f32 %v478, %v479
      %v481 = vrot.slane %v480, 2
      %v482 = vadd.f32 %v480, %v481
      %v483 = vrot.slane %v482, 1
      %v484 = vadd.f32 %v482, %v483
      %v485 = vadd.f32 %v461, %v467
      %v486 = vrot.slane %v485, 4
      %v487 = vadd.f32 %v485, %v486
      %v488 = vrot.slane %v487, 2
      %v489 = vadd.f32 %v487, %v488
      %v490 = vrot.slane %v489, 1
      %v491 = vadd.f32 %v489, %v490
      %v492 = vadd.f32 %v463, %v469
      %v493 = vrot.slane %v492, 4
      %v494 = vadd.f32 %v492, %v493
      %v495 = vrot.slane %v494, 2
      %v496 = vadd.f32 %v494, %v495
      %v497 = vrot.slane %v496, 1
      %v498 = vadd.f32 %v496, %v497
      %v503 = vcombine.low %v477, %v484
      %v504 = vcombine.low %v491, %v498
      %v506 = vunpack.c.l.s4 1966171168
      %v507 = vunpack.c.0.s8 %v506
      %v508 = vlaneseq
      %v509 = vshrl.u32 %v508, 7
      %v510 = vsub.s32 %v507, %v509
      %v511 = vrot.slane %v503, %v510
      %v513 = vunpack.c.l.s4 1966171168
      %v514 = vunpack.c.0.s8 %v513
      %v515 = vlaneseq
      %v516 = vshrl.u32 %v515, 7
      %v517 = vsub.s32 %v514, %v516
      %v518 = vrot.slane %v504, %v517
      %v519 = vcombine.low %v511, %v518
      %v521 = vunpack.c.l.s4 1966171168
      %v522 = vunpack.c.0.s8 %v521
      %v523 = vlaneseq
      %v524 = vshrl.u32 %v523, 7
      %v525 = vsub.s32 %v522, %v524
      %v526 = vrot.slane %v519, %v525
      %v528 = vlaneseq
      %vm529 = vcmp.ge.s32.totalorder %v528, 0
      %vm530 = vcmp.lt.s32.totalorder %v528, 512
      %vm531 = vmand %vm529, %vm530
      %532 = vst.msk [vmem:[%s184] ss:$8 sm:$0xf] %vm531, %v526
      %533 = vst.msk [vmem:[%s184] ss:$8 sm:$0x0] %vm531, %v526
      %v534 = vmul.f32 %v384, %v384
      %v535 = vmul.f32 %v386, %v386
      %v536 = vmul.f32 %v461, %v461
      %v537 = vmul.f32 %v463, %v463
      %v538 = vmul.f32 %v390, %v390
      %v539 = vmul.f32 %v392, %v392
      %v540 = vmul.f32 %v467, %v467
      %v541 = vmul.f32 %v469, %v469
      %v542 = vadd.f32 %v534, %v538
      %v543 = vrot.slane %v542, 4
      %v544 = vadd.f32 %v542, %v543
      %v545 = vrot.slane %v544, 2
      %v546 = vadd.f32 %v544, %v545
      %v547 = vrot.slane %v546, 1
      %v548 = vadd.f32 %v546, %v547
      %v549 = vadd.f32 %v535, %v539
      %v550 = vrot.slane %v549, 4
      %v551 = vadd.f32 %v549, %v550
      %v552 = vrot.slane %v551, 2
      %v553 = vadd.f32 %v551, %v552
      %v554 = vrot.slane %v553, 1
      %v555 = vadd.f32 %v553, %v554
      %v556 = vadd.f32 %v536, %v540
      %v557 = vrot.slane %v556, 4
      %v558 = vadd.f32 %v556, %v557
      %v559 = vrot.slane %v558, 2
      %v560 = vadd.f32 %v558, %v559
      %v561 = vrot.slane %v560, 1
      %v562 = vadd.f32 %v560, %v561
      %v563 = vadd.f32 %v537, %v541
      %v564 = vrot.slane %v563, 4
      %v565 = vadd.f32 %v563, %v564
      %v566 = vrot.slane %v565, 2
      %v567 = vadd.f32 %v565, %v566
      %v568 = vrot.slane %v567, 1
      %v569 = vadd.f32 %v567, %v568
      %v574 = vcombine.low %v548, %v555
      %v575 = vcombine.low %v562, %v569
      %v577 = vunpack.c.l.s4 1966171168
      %v578 = vunpack.c.0.s8 %v577
      %v579 = vlaneseq
      %v580 = vshrl.u32 %v579, 7
      %v581 = vsub.s32 %v578, %v580
      %v582 = vrot.slane %v574, %v581
      %v584 = vunpack.c.l.s4 1966171168
      %v585 = vunpack.c.0.s8 %v584
      %v586 = vlaneseq
      %v587 = vshrl.u32 %v586, 7
      %v588 = vsub.s32 %v585, %v587
      %v589 = vrot.slane %v575, %v588
      %v590 = vcombine.low %v582, %v589
      %v592 = vunpack.c.l.s4 1966171168
      %v593 = vunpack.c.0.s8 %v592
      %v594 = vlaneseq
      %v595 = vshrl.u32 %v594, 7
      %v596 = vsub.s32 %v593, %v595
      %v597 = vrot.slane %v590, %v596
      %s599 = scalar_lea.vmem %s184, 1
      %600 = vst.msk [vmem:[%s599] ss:$8 sm:$0xf] %vm531, %v597
      %601 = vst.msk [vmem:[%s599] ss:$8 sm:$0x0] %vm531, %v597
      %p602 = scmp.lt.s32.totalorder %s18, 0
      %s603 = scalar_select %p602, %s18, 0
      %p604 = scmp.lt.s32.totalorder %s17, 1
      %s605 = scalar_select %p604, %s17, 1
      %s606 = smul.addr %s605, 4
      %s607 = smul.addr %s603, 8
      %s608 = sadd.s32 %s606, %s607
      %s609 = smul.addr %s608, 8
      %s610 = scalar_lea.vmem %s2, %s609
      // Predicated region
      $region29: #{upsamplerB_forward.2} parent=27 // pred_check
        %p611 = pneg %p94
      $region30: #{upsamplerB_forward.2} parent=27 // pred_check_branch
        %613 = sbr.rel (%p611) target = $region32
      $region31: #{upsamplerB_forward.2} parent=27 // pred_region
        _
      $region32: #{upsamplerB_forward.2} parent=27 // pred_fallthru
        _
    $region28: #{upsamplerB_forward.2} parent=5 // pred_fallthru
      _
    %p614 = scmp.le.s32.totalorder 2, %s8
    // Predicated region
    $region33: #{upsamplerB_forward.2} parent=5 // pred_check
      %p615 = pneg %p614
    $region34: #{upsamplerB_forward.2} parent=5 // pred_check_branch
      %617 = sbr.rel (%p615) target = $region36
    $region35: #{upsamplerB_forward.2} parent=5 // pred_region
      %s618 = ssub.s32 %s8, 2
      // Predicated region
      $region37: #{upsamplerB_forward.2} parent=35 // pred_check
        %p619 = pneg %p100
      $region38: #{upsamplerB_forward.2} parent=35 // pred_check_branch
        %621 = sbr.rel (%p619) target = $region40
      $region39: #{upsamplerB_forward.2} parent=35 // pred_region
        %p622 = scmp.lt.s32.totalorder %s20, 0
        %s623 = scalar_select %p622, %s20, 0
        %p624 = scmp.lt.s32.totalorder %s19, 1
        %s625 = scalar_select %p624, %s19, 1
        %s626 = smul.addr %s625, 4
        %s627 = smul.addr %s623, 8
        %s628 = sadd.s32 %s626, %s627
        %s629 = smul.addr %s628, 8
        %s630 = scalar_lea.vmem %s2, %s629
      $region40: #{upsamplerB_forward.2} parent=35 // pred_fallthru
        _
    $region36: #{upsamplerB_forward.2} parent=5 // pred_fallthru
      _
  $region6: #{upsamplerB_forward.2} parent=0 // loop_footer
    %s12 = sadd.s32 1, %s8
  $region7: #{upsamplerB_forward.2} parent=0 // loop_footer_branch
    %7 = sbr.rel target = $region3
  $region8: #{upsamplerB_forward.2} parent=0 // loop_exit
    _

// kernel: tile.13
$region0: #{tile.13}
  #allocation0 [shape = 's32[1]{0}', space=sflag, size = 0x4, scoped, tag = 'scoped memory for tile.13']
  %s0 = inlined_call_operand.vmem [shape: f32[8], index: 0, kind: input, shape index: {}]
  %s1 = inlined_call_operand.vmem [shape: f32[64,8], index: 1, kind: output, shape index: {}]
  // Predicated region
  $region2: #{tile.13} parent=0 // pred_check
    _
  $region3: #{tile.13} parent=0 // pred_check_branch
    %3 = sbr.rel (0) target = $region5
  $region4: #{tile.13} parent=0 // pred_region
    _
  $region5: #{tile.13} parent=0 // pred_fallthru
    _
  %v4 = vld [vmem:[%s0] ss:$0 sm:$0xff]
  %5 = vst [vmem:[%s1] sm:$0xff] %v4
  %s6 = scalar_lea.vmem %s1, 8
  %7 = vst [vmem:[%s6] sm:$0xff] %v4
  %s8 = scalar_lea.vmem %s1, 16
  %9 = vst [vmem:[%s8] sm:$0xff] %v4
  %s10 = scalar_lea.vmem %s1, 24
  %11 = vst [vmem:[%s10] sm:$0xff] %v4
  %s12 = scalar_lea.vmem %s1, 32
  %13 = vst [vmem:[%s12] sm:$0xff] %v4
  %s14 = scalar_lea.vmem %s1, 40
  %15 = vst [vmem:[%s14] sm:$0xff] %v4
  %s16 = scalar_lea.vmem %s1, 48
  %17 = vst [vmem:[%s16] sm:$0xff] %v4
  %s18 = scalar_lea.vmem %s1, 56
  %19 = vst [vmem:[%s18] sm:$0xff] %v4

// kernel: upsamplerB_forward.3
$region0: #{upsamplerB_forward.3}
  #allocation0 [shape = 'u32[]', space=smem, size = 0x4, offset = 0x4, fixed_abs, tag = 'smem constant byte address 0x4 - core index']
  #allocation1 [shape = 'u32[144,128]{1,0:T(1,128)}', space=vmem, size = 0x12000, scoped, tag = 'internal scratch']
  %s0 = inlined_call_operand.vmem [shape: f32[1,32,256], index: 0, kind: input, shape index: {}]
  %s1 = inlined_call_operand.vmem [shape: f32[256,512], index: 1, kind: input, shape index: {}]
  %s2 = inlined_call_operand.vmem [shape: f32[1,512], index: 2, kind: input, shape index: {}]
  %s3 = inlined_call_operand.vmem [shape: f32[1,512], index: 3, kind: input, shape index: {}]
  %s4 = inlined_call_operand.vmem [shape: f32[1,32,512], index: 4, kind: output, shape index: {}]
  %s5 = sld [smem:[#allocation0]]
  $region49: #{upsamplerB_forward.3} parent=0
    _
  %s7 = ssub.s32 1, %s5
  %s8 = scalar_select 0, %s7, %s5
  loop: start=0, step=1, limit=4
  $region2: #{upsamplerB_forward.3} parent=0 // loop_pre_header
    _
  $region3: #{upsamplerB_forward.3} parent=0 // loop_header
    %s10 = sphi 0, %s14
    %p11 = scmp.ge.s32.totalorder %s10, 4
    %s17 = sphi 0, %s29
    %s18 = sphi 0, %s25
    %s19 = sphi 0, %s17
    %s20 = sphi 0, %s18
    %s21 = sphi 0, %s19
    %s22 = sphi 0, %s20
    %s34 = sphi 0, %s36
    %s37 = sphi 0, %s34
    %s38 = sphi 0, %s37
    %s54 = sphi 0, %s38
    %s58 = sphi 0, %s58
    %s60 = sphi 0, %s58
    %s61 = sphi 0, %s60
    %s75 = sphi 0, %s61
    %s79 = sphi 0, %s79
    %s81 = sphi 0, %s79
    %s82 = sphi 0, %s81
    %s96 = sphi 0, %s82
    %s100 = sphi 0, %s100
    %s102 = sphi 0, %s100
    %s103 = sphi 0, %s102
    %s117 = sphi 0, %s103
    %s125 = sphi 0, %s127
    %s128 = sphi 0, %s125
    %s129 = sphi 0, %s128
    %s145 = sphi 0, %s129
  $region4: #{upsamplerB_forward.3} parent=0 // loop_header_branch
    %13 = sbr.rel (%p11) target = $region8
  $region5: #{upsamplerB_forward.3} parent=0 // loop_body
    %s15 = ssub.s32 %s10, 1
    %s16 = ssub.s32 %s10, 2
    %s23 = sadd.s32 1, %s18
    %p24 = scmp.ge.s32.totalorder %s23, 1
    %s25 = scalar_select %p24, 0, %s23
    %s26 = sadd.s32 1, %s17
    %s27 = scalar_select %p24, %s26, %s17
    %p28 = scmp.ge.s32.totalorder %s27, 2
    %s29 = scalar_select %p28, 0, %s27
    %s30 = ssub.s32 %s18, %s25
    %s31 = ssub.s32 %s17, %s29
    %s32 = sor.u32 %s30, %s31
    %p33 = scmp.eq.s32.totalorder %s32, 0
    %s35 = sadd.s32 %s34, 1
    %s36 = scalar_select %p33, %s34, %s35
    %p39 = pneg %p33
    %p40 = scmp.eq.s32.totalorder %s10, 1
    %p41 = por %p39, %p40
    %p42 = scmp.ne.s32.totalorder %s34, %s37
    %p43 = scmp.eq.s32.totalorder %s10, 0
    %p44 = por %p42, %p43
    %p45 = scmp.ne.s32.totalorder %s34, %s37
    %p46 = scmp.eq.s32.totalorder %s15, 1
    %p47 = por %p45, %p46
    %p48 = scmp.ne.s32.totalorder %s37, %s38
    %p49 = scmp.eq.s32.totalorder %s15, 0
    %p50 = por %p48, %p49
    %p51 = scmp.ne.s32.totalorder %s37, %s38
    %p52 = scmp.eq.s32.totalorder %s16, 1
    %p53 = por %p51, %p52
    %p55 = scmp.ne.s32.totalorder %s38, %s54
    %p56 = scmp.eq.s32.totalorder %s16, 0
    %p57 = por %p55, %p56
    %s59 = sadd.s32 %s58, 1
    %p62 = scmp.eq.s32.totalorder %s10, 1
    %p63 = scmp.ne.s32.totalorder %s58, %s60
    %p64 = scmp.eq.s32.totalorder %s10, 0
    %p65 = por %p63, %p64
    %p66 = scmp.ne.s32.totalorder %s58, %s60
    %p67 = scmp.eq.s32.totalorder %s15, 1
    %p68 = por %p66, %p67
    %p69 = scmp.ne.s32.totalorder %s60, %s61
    %p70 = scmp.eq.s32.totalorder %s15, 0
    %p71 = por %p69, %p70
    %p72 = scmp.ne.s32.totalorder %s60, %s61
    %p73 = scmp.eq.s32.totalorder %s16, 1
    %p74 = por %p72, %p73
    %p76 = scmp.ne.s32.totalorder %s61, %s75
    %p77 = scmp.eq.s32.totalorder %s16, 0
    %p78 = por %p76, %p77
    %s80 = sadd.s32 %s79, 1
    %p83 = scmp.eq.s32.totalorder %s10, 1
    %p84 = scmp.ne.s32.totalorder %s79, %s81
    %p85 = scmp.eq.s32.totalorder %s10, 0
    %p86 = por %p84, %p85
    %p87 = scmp.ne.s32.totalorder %s79, %s81
    %p88 = scmp.eq.s32.totalorder %s15, 1
    %p89 = por %p87, %p88
    %p90 = scmp.ne.s32.totalorder %s81, %s82
    %p91 = scmp.eq.s32.totalorder %s15, 0
    %p92 = por %p90, %p91
    %p93 = scmp.ne.s32.totalorder %s81, %s82
    %p94 = scmp.eq.s32.totalorder %s16, 1
    %p95 = por %p93, %p94
    %p97 = scmp.ne.s32.totalorder %s82, %s96
    %p98 = scmp.eq.s32.totalorder %s16, 0
    %p99 = por %p97, %p98
    %s101 = sadd.s32 %s100, 1
    %p104 = scmp.eq.s32.totalorder %s10, 1
    %p105 = scmp.ne.s32.totalorder %s100, %s102
    %p106 = scmp.eq.s32.totalorder %s10, 0
    %p107 = por %p105, %p106
    %p108 = scmp.ne.s32.totalorder %s100, %s102
    %p109 = scmp.eq.s32.totalorder %s15, 1
    %p110 = por %p108, %p109
    %p111 = scmp.ne.s32.totalorder %s102, %s103
    %p112 = scmp.eq.s32.totalorder %s15, 0
    %p113 = por %p111, %p112
    %p114 = scmp.ne.s32.totalorder %s102, %s103
    %p115 = scmp.eq.s32.totalorder %s16, 1
    %p116 = por %p114, %p115
    %p118 = scmp.ne.s32.totalorder %s103, %s117
    %p119 = scmp.eq.s32.totalorder %s16, 0
    %p120 = por %p118, %p119
    %s121 = ssub.s32 %s18, %s25
    %s122 = ssub.s32 %s17, %s29
    %s123 = sor.u32 %s121, %s122
    %p124 = scmp.eq.s32.totalorder %s123, 0
    %s126 = sadd.s32 %s125, 1
    %s127 = scalar_select %p124, %s125, %s126
    %p130 = pneg %p124
    %p131 = scmp.eq.s32.totalorder %s10, 1
    %p132 = por %p130, %p131
    %p133 = scmp.ne.s32.totalorder %s125, %s128
    %p134 = scmp.eq.s32.totalorder %s10, 0
    %p135 = por %p133, %p134
    %p136 = scmp.ne.s32.totalorder %s125, %s128
    %p137 = scmp.eq.s32.totalorder %s15, 1
    %p138 = por %p136, %p137
    %p139 = scmp.ne.s32.totalorder %s128, %s129
    %p140 = scmp.eq.s32.totalorder %s15, 0
    %p141 = por %p139, %p140
    %p142 = scmp.ne.s32.totalorder %s128, %s129
    %p143 = scmp.eq.s32.totalorder %s16, 1
    %p144 = por %p142, %p143
    %p146 = scmp.ne.s32.totalorder %s129, %s145
    %p147 = scmp.eq.s32.totalorder %s16, 0
    %p148 = por %p146, %p147
    %p149 = scmp.le.s32.totalorder 1, %s10
    %p150 = scmp.lt.s32.totalorder %s10, 3
    %p151 = pnand %p149, %p150
    %p152 = pneg %p151
    // Predicated region
    $region9: #{upsamplerB_forward.3} parent=5 // pred_check
      _
    $region10: #{upsamplerB_forward.3} parent=5 // pred_check_branch
      %154 = sbr.rel (%p151) target = $region12
    $region11: #{upsamplerB_forward.3} parent=5 // pred_region
      %s155 = ssub.s32 %s10, 1
      // Predicated region
      $region13: #{upsamplerB_forward.3} parent=11 // pred_check
        %p156 = pneg %p71
      $region14: #{upsamplerB_forward.3} parent=11 // pred_check_branch
        %158 = sbr.rel (%p156) target = $region16
      $region15: #{upsamplerB_forward.3} parent=11 // pred_region
        _
      $region16: #{upsamplerB_forward.3} parent=11 // pred_fallthru
        _
      // Predicated region
      $region17: #{upsamplerB_forward.3} parent=11 // pred_check
        %p159 = pneg %p92
      $region18: #{upsamplerB_forward.3} parent=11 // pred_check_branch
        %161 = sbr.rel (%p159) target = $region20
      $region19: #{upsamplerB_forward.3} parent=11 // pred_region
        _
      $region20: #{upsamplerB_forward.3} parent=11 // pred_fallthru
        _
      // Predicated region
      $region21: #{upsamplerB_forward.3} parent=11 // pred_check
        %p162 = pneg %p113
      $region22: #{upsamplerB_forward.3} parent=11 // pred_check_branch
        %164 = sbr.rel (%p162) target = $region24
      $region23: #{upsamplerB_forward.3} parent=11 // pred_region
        _
      $region24: #{upsamplerB_forward.3} parent=11 // pred_fallthru
        _
    $region12: #{upsamplerB_forward.3} parent=5 // pred_fallthru
      _
    %p165 = scmp.lt.s32.totalorder %s10, 2
    // Predicated region
    $region25: #{upsamplerB_forward.3} parent=5 // pred_check
      %p166 = pneg %p165
    $region26: #{upsamplerB_forward.3} parent=5 // pred_check_branch
      %168 = sbr.rel (%p166) target = $region28
    $region27: #{upsamplerB_forward.3} parent=5 // pred_region
      // Predicated region
      $region29: #{upsamplerB_forward.3} parent=27 // pred_check
        %p169 = pneg %p44
      $region30: #{upsamplerB_forward.3} parent=27 // pred_check_branch
        %171 = sbr.rel (%p169) target = $region32
      $region31: #{upsamplerB_forward.3} parent=27 // pred_region
        %s172 = smul.u32 2, %s17
        %p173 = scmp.lt.s32.totalorder %s18, 0
        %s174 = scalar_select %p173, %s18, 0
        %p175 = scmp.lt.s32.totalorder %s172, 3
        %s176 = scalar_select %p175, %s172, 3
        %s177 = smul.addr %s176, 2
        %s178 = smul.addr %s174, 8
        %s179 = sadd.s32 %s177, %s178
        %s180 = smul.addr %s179, 8
        %s181 = scalar_lea.vmem %s0, %s180
        %s182 = smul.u32 2, %s17
      $region32: #{upsamplerB_forward.3} parent=27 // pred_fallthru
        _
    $region28: #{upsamplerB_forward.3} parent=5 // pred_fallthru
      _
    %p183 = scmp.le.s32.totalorder 1, %s10
    %p184 = scmp.lt.s32.totalorder %s10, 3
    %p185 = pnand %p183, %p184
    %p186 = pneg %p185
    // Predicated region
    $region33: #{upsamplerB_forward.3} parent=5 // pred_check
      _
    $region34: #{upsamplerB_forward.3} parent=5 // pred_check_branch
      %188 = sbr.rel (%p185) target = $region36
    $region35: #{upsamplerB_forward.3} parent=5 // pred_region
      %s189 = ssub.s32 %s10, 1
      %s190 = smul.u32 2, %s19
      %p191 = scmp.lt.s32.totalorder %s20, 0
      %s192 = scalar_select %p191, %s20, 0
      %p193 = scmp.lt.s32.totalorder %s190, 3
      %s194 = scalar_select %p193, %s190, 3
      %s195 = smul.addr %s194, 2
      %s196 = smul.addr %s192, 8
      %s197 = sadd.s32 %s195, %s196
      %s198 = smul.addr %s197, 8
      %s199 = scalar_lea.vmem %s0, %s198
      %p200 = pneg %p50
      %p201 = pneg %p47
      %p202 = pneg %p71
      %p203 = pneg %p68
      %p204 = pneg %p92
      %p205 = pneg %p89
      %p206 = pneg %p113
      %p207 = pneg %p110
      %p208 = pneg %p141
      %p209 = pneg %p138
      %s210 = smul.u32 2, %s19
      %p211 = scmp.lt.s32.totalorder %s20, 0
      %s212 = scalar_select %p211, %s20, 0
      %p213 = scmp.lt.s32.totalorder %s210, 3
      %s214 = scalar_select %p213, %s210, 3
      %s215 = smul.addr %s214, 4
      %s216 = smul.addr %s212, 16
      %s217 = sadd.s32 %s215, %s216
      %s218 = smul.addr %s217, 8
      %s219 = scalar_lea.vmem %s4, %s218
      %s220 = smul.u32 2, %s19
      %p221 = scmp.lt.s32.totalorder %s20, 0
      %s222 = scalar_select %p221, %s20, 0
      %p223 = scmp.lt.s32.totalorder %s220, 3
      %s224 = scalar_select %p223, %s220, 3
      %s225 = smul.addr %s224, 2
      %s226 = smul.addr %s222, 8
      %s227 = sadd.s32 %s225, %s226
      %s228 = smul.addr %s227, 8
      %s229 = scalar_lea.vmem %s0, %s228
      %s230 = smul.u32 2, %s19
      %s231 = smul.u32 2, %s19
      %p232 = scmp.lt.s32.totalorder %s20, 0
      %s233 = scalar_select %p232, %s20, 0
      %p234 = scmp.lt.s32.totalorder %s231, 3
      %s235 = scalar_select %p234, %s231, 3
      %s236 = smul.addr %s235, 4
      %s237 = smul.addr %s233, 16
      %s238 = sadd.s32 %s236, %s237
      %s239 = smul.addr %s238, 8
      %s240 = scalar_lea.vmem %s4, %s239
      %s241 = smul.u32 2, %s19
      %v242 = vld [vmem:[%s229] sm:$0xff]
      %v243 = vld [vmem:[%s229 + $0x8] sm:$0xff]
      %v244 = vld [vmem:[%s229 + $0x10] sm:$0xff]
      %v245 = vld [vmem:[%s229 + $0x18] sm:$0xff]
      %v246 = vld [vmem:[%s1] sm:$0xff]
      %v247 = vld [vmem:[%s1 + $0x8] sm:$0xff]
      %v248 = vld [vmem:[%s1 + $0x10] sm:$0xff]
      %v249 = vld [vmem:[%s1 + $0x18] sm:$0xff]
      %v250 = vld [vmem:[%s1 + $0x20] sm:$0xff]
      %v251 = vld [vmem:[%s1 + $0x28] sm:$0xff]
      %v252 = vld [vmem:[%s1 + $0x30] sm:$0xff]
      %v253 = vld [vmem:[%s1 + $0x38] sm:$0xff]
      %v254 = vld [vmem:[%s1 + $0x40] sm:$0xff]
      %v255 = vld [vmem:[%s1 + $0x48] sm:$0xff]
      %v256 = vld [vmem:[%s1 + $0x50] sm:$0xff]
      %v257 = vld [vmem:[%s1 + $0x58] sm:$0xff]
      %v258 = vld [vmem:[%s1 + $0x60] sm:$0xff]
      %v259 = vld [vmem:[%s1 + $0x68] sm:$0xff]
      %v260 = vld [vmem:[%s1 + $0x70] sm:$0xff]
      %v261 = vld [vmem:[%s1 + $0x78] sm:$0xff]
      %v262 = vld [vmem:[%s1 + $0x80] sm:$0xff]
      %v263 = vld [vmem:[%s1 + $0x88] sm:$0xff]
      %v264 = vld [vmem:[%s1 + $0x90] sm:$0xff]
      %v265 = vld [vmem:[%s1 + $0x98] sm:$0xff]
      %v266 = vld [vmem:[%s1 + $0xa0] sm:$0xff]
      %v267 = vld [vmem:[%s1 + $0xa8] sm:$0xff]
      %v268 = vld [vmem:[%s1 + $0xb0] sm:$0xff]
      %v269 = vld [vmem:[%s1 + $0xb8] sm:$0xff]
      %v270 = vld [vmem:[%s1 + $0xc0] sm:$0xff]
      %v271 = vld [vmem:[%s1 + $0xc8] sm:$0xff]
      %v272 = vld [vmem:[%s1 + $0xd0] sm:$0xff]
      %v273 = vld [vmem:[%s1 + $0xd8] sm:$0xff]
      %v274 = vld [vmem:[%s1 + $0xe0] sm:$0xff]
      %v275 = vld [vmem:[%s1 + $0xe8] sm:$0xff]
      %v276 = vld [vmem:[%s1 + $0xf0] sm:$0xff]
      %v277 = vld [vmem:[%s1 + $0xf8] sm:$0xff]
      %v278 = vld [vmem:[%s1 + $0x100] sm:$0xff]
      %v279 = vld [vmem:[%s1 + $0x108] sm:$0xff]
      %v280 = vld [vmem:[%s1 + $0x110] sm:$0xff]
      %v281 = vld [vmem:[%s1 + $0x118] sm:$0xff]
      %v282 = vld [vmem:[%s1 + $0x120] sm:$0xff]
      %v283 = vld [vmem:[%s1 + $0x128] sm:$0xff]
      %v284 = vld [vmem:[%s1 + $0x130] sm:$0xff]
      %v285 = vld [vmem:[%s1 + $0x138] sm:$0xff]
      %v286 = vld [vmem:[%s1 + $0x140] sm:$0xff]
      %v287 = vld [vmem:[%s1 + $0x148] sm:$0xff]
      %v288 = vld [vmem:[%s1 + $0x150] sm:$0xff]
      %v289 = vld [vmem:[%s1 + $0x158] sm:$0xff]
      %v290 = vld [vmem:[%s1 + $0x160] sm:$0xff]
      %v291 = vld [vmem:[%s1 + $0x168] sm:$0xff]
      %v292 = vld [vmem:[%s1 + $0x170] sm:$0xff]
      %v293 = vld [vmem:[%s1 + $0x178] sm:$0xff]
      %v294 = vld [vmem:[%s1 + $0x180] sm:$0xff]
      %v295 = vld [vmem:[%s1 + $0x188] sm:$0xff]
      %v296 = vld [vmem:[%s1 + $0x190] sm:$0xff]
      %v297 = vld [vmem:[%s1 + $0x198] sm:$0xff]
      %v298 = vld [vmem:[%s1 + $0x1a0] sm:$0xff]
      %v299 = vld [vmem:[%s1 + $0x1a8] sm:$0xff]
      %v300 = vld [vmem:[%s1 + $0x1b0] sm:$0xff]
      %v301 = vld [vmem:[%s1 + $0x1b8] sm:$0xff]
      %v302 = vld [vmem:[%s1 + $0x1c0] sm:$0xff]
      %v303 = vld [vmem:[%s1 + $0x1c8] sm:$0xff]
      %v304 = vld [vmem:[%s1 + $0x1d0] sm:$0xff]
      %v305 = vld [vmem:[%s1 + $0x1d8] sm:$0xff]
      %v306 = vld [vmem:[%s1 + $0x1e0] sm:$0xff]
      %v307 = vld [vmem:[%s1 + $0x1e8] sm:$0xff]
      %v308 = vld [vmem:[%s1 + $0x1f0] sm:$0xff]
      %v309 = vld [vmem:[%s1 + $0x1f8] sm:$0xff]
      %v310 = vld [vmem:[%s1 + $0x200] sm:$0xff]
      %v311 = vld [vmem:[%s1 + $0x208] sm:$0xff]
      %v312 = vld [vmem:[%s1 + $0x210] sm:$0xff]
      %v313 = vld [vmem:[%s1 + $0x218] sm:$0xff]
      %v314 = vld [vmem:[%s1 + $0x220] sm:$0xff]
      %v315 = vld [vmem:[%s1 + $0x228] sm:$0xff]
      %v316 = vld [vmem:[%s1 + $0x230] sm:$0xff]
      %v317 = vld [vmem:[%s1 + $0x238] sm:$0xff]
      %v318 = vld [vmem:[%s1 + $0x240] sm:$0xff]
      %v319 = vld [vmem:[%s1 + $0x248] sm:$0xff]
      %v320 = vld [vmem:[%s1 + $0x250] sm:$0xff]
      %v321 = vld [vmem:[%s1 + $0x258] sm:$0xff]
      %v322 = vld [vmem:[%s1 + $0x260] sm:$0xff]
      %v323 = vld [vmem:[%s1 + $0x268] sm:$0xff]
      %v324 = vld [vmem:[%s1 + $0x270] sm:$0xff]
      %v325 = vld [vmem:[%s1 + $0x278] sm:$0xff]
      %v326 = vld [vmem:[%s1 + $0x280] sm:$0xff]
      %v327 = vld [vmem:[%s1 + $0x288] sm:$0xff]
      %v328 = vld [vmem:[%s1 + $0x290] sm:$0xff]
      %v329 = vld [vmem:[%s1 + $0x298] sm:$0xff]
      %v330 = vld [vmem:[%s1 + $0x2a0] sm:$0xff]
      %v331 = vld [vmem:[%s1 + $0x2a8] sm:$0xff]
      %v332 = vld [vmem:[%s1 + $0x2b0] sm:$0xff]
      %v333 = vld [vmem:[%s1 + $0x2b8] sm:$0xff]
      %v334 = vld [vmem:[%s1 + $0x2c0] sm:$0xff]
      %v335 = vld [vmem:[%s1 + $0x2c8] sm:$0xff]
      %v336 = vld [vmem:[%s1 + $0x2d0] sm:$0xff]
      %v337 = vld [vmem:[%s1 + $0x2d8] sm:$0xff]
      %v338 = vld [vmem:[%s1 + $0x2e0] sm:$0xff]
      %v339 = vld [vmem:[%s1 + $0x2e8] sm:$0xff]
      %v340 = vld [vmem:[%s1 + $0x2f0] sm:$0xff]
      %v341 = vld [vmem:[%s1 + $0x2f8] sm:$0xff]
      %v342 = vld [vmem:[%s1 + $0x300] sm:$0xff]
      %v343 = vld [vmem:[%s1 + $0x308] sm:$0xff]
      %v344 = vld [vmem:[%s1 + $0x310] sm:$0xff]
      %v345 = vld [vmem:[%s1 + $0x318] sm:$0xff]
      %v346 = vld [vmem:[%s1 + $0x320] sm:$0xff]
      %v347 = vld [vmem:[%s1 + $0x328] sm:$0xff]
      %v348 = vld [vmem:[%s1 + $0x330] sm:$0xff]
      %v349 = vld [vmem:[%s1 + $0x338] sm:$0xff]
      %v350 = vld [vmem:[%s1 + $0x340] sm:$0xff]
      %v351 = vld [vmem:[%s1 + $0x348] sm:$0xff]
      %v352 = vld [vmem:[%s1 + $0x350] sm:$0xff]
      %v353 = vld [vmem:[%s1 + $0x358] sm:$0xff]
      %v354 = vld [vmem:[%s1 + $0x360] sm:$0xff]
      %v355 = vld [vmem:[%s1 + $0x368] sm:$0xff]
      %v356 = vld [vmem:[%s1 + $0x370] sm:$0xff]
      %v357 = vld [vmem:[%s1 + $0x378] sm:$0xff]
      %v358 = vld [vmem:[%s1 + $0x380] sm:$0xff]
      %v359 = vld [vmem:[%s1 + $0x388] sm:$0xff]
      %v360 = vld [vmem:[%s1 + $0x390] sm:$0xff]
      %v361 = vld [vmem:[%s1 + $0x398] sm:$0xff]
      %v362 = vld [vmem:[%s1 + $0x3a0] sm:$0xff]
      %v363 = vld [vmem:[%s1 + $0x3a8] sm:$0xff]
      %v364 = vld [vmem:[%s1 + $0x3b0] sm:$0xff]
      %v365 = vld [vmem:[%s1 + $0x3b8] sm:$0xff]
      %v366 = vld [vmem:[%s1 + $0x3c0] sm:$0xff]
      %v367 = vld [vmem:[%s1 + $0x3c8] sm:$0xff]
      %v368 = vld [vmem:[%s1 + $0x3d0] sm:$0xff]
      %v369 = vld [vmem:[%s1 + $0x3d8] sm:$0xff]
      %v370 = vld [vmem:[%s1 + $0x3e0] sm:$0xff]
      %v371 = vld [vmem:[%s1 + $0x3e8] sm:$0xff]
      %v372 = vld [vmem:[%s1 + $0x3f0] sm:$0xff]
      %v373 = vld [vmem:[%s1 + $0x3f8] sm:$0xff]
      %374 = vmatprep.subr.mxu0 %v247
      %375 = vmatpush1.msra.mxu0 %v246
      %376 = vmatprep.subr.mxu0 %v251
      %377 = vmatpush1.msra.mxu0 %v250
      %378 = vmatprep.subr.mxu0 %v255
      %379 = vmatpush1.msra.mxu0 %v254
      %380 = vmatprep.subr.mxu0 %v259
      %381 = vmatpush1.msra.mxu0 %v258
      %382 = vmatprep.subr.mxu0 %v263
      %383 = vmatpush1.msra.mxu0 %v262
      %384 = vmatprep.subr.mxu0 %v267
      %385 = vmatpush1.msra.mxu0 %v266
      %386 = vmatprep.subr.mxu0 %v271
      %387 = vmatpush1.msra.mxu0 %v270
      %388 = vmatprep.subr.mxu0 %v275
      %389 = vmatpush1.msra.mxu0 %v274
      %390 = vmatprep.subr.mxu0 %v279
      %391 = vmatpush1.msra.mxu0 %v278
      %392 = vmatprep.subr.mxu0 %v283
      %393 = vmatpush1.msra.mxu0 %v282
      %394 = vmatprep.subr.mxu0 %v287
      %395 = vmatpush1.msra.mxu0 %v286
      %396 = vmatprep.subr.mxu0 %v291
      %397 = vmatpush1.msra.mxu0 %v290
      %398 = vmatprep.subr.mxu0 %v295
      %399 = vmatpush1.msra.mxu0 %v294
      %400 = vmatprep.subr.mxu0 %v299
      %401 = vmatpush1.msra.mxu0 %v298
      %402 = vmatprep.subr.mxu0 %v303
      %403 = vmatpush1.msra.mxu0 %v302
      %404 = vmatprep.subr.mxu0 %v307
      %405 = vmatpush1.msra.mxu0 %v306
      %406 = vmatprep.subr.mxu0 %v311
      %407 = vmatpush1.msra.mxu0 %v310
      %408 = vmatprep.subr.mxu0 %v315
      %409 = vmatpush1.msra.mxu0 %v314
      %410 = vmatprep.subr.mxu0 %v319
      %411 = vmatpush1.msra.mxu0 %v318
      %412 = vmatprep.subr.mxu0 %v323
      %413 = vmatpush1.msra.mxu0 %v322
      %414 = vmatprep.subr.mxu0 %v327
      %415 = vmatpush1.msra.mxu0 %v326
      %416 = vmatprep.subr.mxu0 %v331
      %417 = vmatpush1.msra.mxu0 %v330
      %418 = vmatprep.subr.mxu0 %v335
      %419 = vmatpush1.msra.mxu0 %v334
      %420 = vmatprep.subr.mxu0 %v339
      %421 = vmatpush1.msra.mxu0 %v338
      %422 = vmatprep.subr.mxu0 %v343
      %423 = vmatpush1.msra.mxu0 %v342
      %424 = vmatprep.subr.mxu0 %v347
      %425 = vmatpush1.msra.mxu0 %v346
      %426 = vmatprep.subr.mxu0 %v351
      %427 = vmatpush1.msra.mxu0 %v350
      %428 = vmatprep.subr.mxu0 %v355
      %429 = vmatpush1.msra.mxu0 %v354
      %430 = vmatprep.subr.mxu0 %v359
      %431 = vmatpush1.msra.mxu0 %v358
      %432 = vmatprep.subr.mxu0 %v363
      %433 = vmatpush1.msra.mxu0 %v362
      %434 = vmatprep.subr.mxu0 %v367
      %435 = vmatpush1.msra.mxu0 %v366
      %436 = vmatprep.subr.mxu0 %v371
      %437 = vmatpush1.msra.mxu0 %v370
      %438 = vmatprep.mubr.f32.mxu0 %v243
      %439 = vmatmul.mubr.f32.gmra.mrb[0].mxu0 %v242
      %v440 = vpop.f32.mrb[0].mxu0
      %v441 = vadd.f32 0.0, %v440
      %v442 = vpop.f32.mrb[0].mxu0
      %v443 = vadd.f32 0.0, %v442
      %444 = vmatprep.mubr.f32.mxu0 %v245
      %445 = vmatmul.mubr.f32.gmra.mrb[0].mxu0 %v244
      %v446 = vpop.f32.mrb[0].mxu0
      %v447 = vadd.f32 0.0, %v446
      %v448 = vpop.f32.mrb[0].mxu0
      %v449 = vadd.f32 0.0, %v448
      %450 = vdwg.mxu0
      %451 = vmatprep.subr.mxu0 %v249
      %452 = vmatpush1.msra.mxu0 %v248
      %453 = vmatprep.subr.mxu0 %v253
      %454 = vmatpush1.msra.mxu0 %v252
      %455 = vmatprep.subr.mxu0 %v257
      %456 = vmatpush1.msra.mxu0 %v256
      %457 = vmatprep.subr.mxu0 %v261
      %458 = vmatpush1.msra.mxu0 %v260
      %459 = vmatprep.subr.mxu0 %v265
      %460 = vmatpush1.msra.mxu0 %v264
      %461 = vmatprep.subr.mxu0 %v269
      %462 = vmatpush1.msra.mxu0 %v268
      %463 = vmatprep.subr.mxu0 %v273
      %464 = vmatpush1.msra.mxu0 %v272
      %465 = vmatprep.subr.mxu0 %v277
      %466 = vmatpush1.msra.mxu0 %v276
      %467 = vmatprep.subr.mxu0 %v281
      %468 = vmatpush1.msra.mxu0 %v280
      %469 = vmatprep.subr.mxu0 %v285
      %470 = vmatpush1.msra.mxu0 %v284
      %471 = vmatprep.subr.mxu0 %v289
      %472 = vmatpush1.msra.mxu0 %v288
      %473 = vmatprep.subr.mxu0 %v293
      %474 = vmatpush1.msra.mxu0 %v292
      %475 = vmatprep.subr.mxu0 %v297
      %476 = vmatpush1.msra.mxu0 %v296
      %477 = vmatprep.subr.mxu0 %v301
      %478 = vmatpush1.msra.mxu0 %v300
      %479 = vmatprep.subr.mxu0 %v305
      %480 = vmatpush1.msra.mxu0 %v304
      %481 = vmatprep.subr.mxu0 %v309
      %482 = vmatpush1.msra.mxu0 %v308
      %483 = vmatprep.subr.mxu0 %v313
      %484 = vmatpush1.msra.mxu0 %v312
      %485 = vmatprep.subr.mxu0 %v317
      %486 = vmatpush1.msra.mxu0 %v316
      %487 = vmatprep.subr.mxu0 %v321
      %488 = vmatpush1.msra.mxu0 %v320
      %489 = vmatprep.subr.mxu0 %v325
      %490 = vmatpush1.msra.mxu0 %v324
      %491 = vmatprep.subr.mxu0 %v329
      %492 = vmatpush1.msra.mxu0 %v328
      %493 = vmatprep.subr.mxu0 %v333
      %494 = vmatpush1.msra.mxu0 %v332
      %495 = vmatprep.subr.mxu0 %v337
      %496 = vmatpush1.msra.mxu0 %v336
      %497 = vmatprep.subr.mxu0 %v341
      %498 = vmatpush1.msra.mxu0 %v340
      %499 = vmatprep.subr.mxu0 %v345
      %500 = vmatpush1.msra.mxu0 %v344
      %501 = vmatprep.subr.mxu0 %v349
      %502 = vmatpush1.msra.mxu0 %v348
      %503 = vmatprep.subr.mxu0 %v353
      %504 = vmatpush1.msra.mxu0 %v352
      %505 = vmatprep.subr.mxu0 %v357
      %506 = vmatpush1.msra.mxu0 %v356
      %507 = vmatprep.subr.mxu0 %v361
      %508 = vmatpush1.msra.mxu0 %v360
      %509 = vmatprep.subr.mxu0 %v365
      %510 = vmatpush1.msra.mxu0 %v364
      %511 = vmatprep.subr.mxu0 %v369
      %512 = vmatpush1.msra.mxu0 %v368
      %513 = vmatprep.subr.mxu0 %v373
      %514 = vmatpush1.msra.mxu0 %v372
      %515 = vmatprep.mubr.f32.mxu0 %v243
      %516 = vmatmul.mubr.f32.gmra.mrb[0].mxu0 %v242
      %v517 = vpop.f32.mrb[0].mxu0
      %v518 = vadd.f32 0.0, %v517
      %v519 = vpop.f32.mrb[0].mxu0
      %v520 = vadd.f32 0.0, %v519
      %521 = vmatprep.mubr.f32.mxu0 %v245
      %522 = vmatmul.mubr.f32.gmra.mrb[0].mxu0 %v244
      %v523 = vpop.f32.mrb[0].mxu0
      %v524 = vadd.f32 0.0, %v523
      %v525 = vpop.f32.mrb[0].mxu0
      %v526 = vadd.f32 0.0, %v525
      %527 = vdwg.mxu0
      %v528 = vld [vmem:[%s2] sm:$0xf]
      %v530 = vlaneseq
      %v531 = vshrl.u32 %v530, 7
      %v532 = vsub.s32 0, %v531
      %v533 = vrot.slane %v528, %v532
      %v534 = vlaneseq
      %v535 = vshrl.u32 %v534, 7
      %v536 = vsub.s32 1, %v535
      %v537 = vrot.slane %v528, %v536
      %v538 = vlaneseq
      %v539 = vshrl.u32 %v538, 7
      %v540 = vsub.s32 2, %v539
      %v541 = vrot.slane %v528, %v540
      %v542 = vlaneseq
      %v543 = vshrl.u32 %v542, 7
      %v544 = vsub.s32 3, %v543
      %v545 = vrot.slane %v528, %v544
      %v550 = vmul.f32 %v441, %v533
      %v551 = vmul.f32 %v443, %v537
      %v552 = vmul.f32 %v518, %v541
      %v553 = vmul.f32 %v520, %v545
      %v554 = vmul.f32 %v447, %v533
      %v555 = vmul.f32 %v449, %v537
      %v556 = vmul.f32 %v524, %v541
      %v557 = vmul.f32 %v526, %v545
      %v558 = vld [vmem:[%s3] sm:$0xf]
      %v560 = vlaneseq
      %v561 = vshrl.u32 %v560, 7
      %v562 = vsub.s32 0, %v561
      %v563 = vrot.slane %v558, %v562
      %v564 = vlaneseq
      %v565 = vshrl.u32 %v564, 7
      %v566 = vsub.s32 1, %v565
      %v567 = vrot.slane %v558, %v566
      %v568 = vlaneseq
      %v569 = vshrl.u32 %v568, 7
      %v570 = vsub.s32 2, %v569
      %v571 = vrot.slane %v558, %v570
      %v572 = vlaneseq
      %v573 = vshrl.u32 %v572, 7
      %v574 = vsub.s32 3, %v573
      %v575 = vrot.slane %v558, %v574
      %v580 = vadd.f32 %v550, %v563
      %v581 = vadd.f32 %v551, %v567
      %v582 = vadd.f32 %v552, %v571
      %v583 = vadd.f32 %v553, %v575
      %v584 = vadd.f32 %v554, %v563
      %v585 = vadd.f32 %v555, %v567
      %v586 = vadd.f32 %v556, %v571
      %v587 = vadd.f32 %v557, %v575
      %v588 = vmax.f32 %v580, 0.0
      %v589 = vmax.f32 %v581, 0.0
      %v590 = vmax.f32 %v582, 0.0
      %v591 = vmax.f32 %v583, 0.0
      %v592 = vmax.f32 %v584, 0.0
      %v593 = vmax.f32 %v585, 0.0
      %v594 = vmax.f32 %v586, 0.0
      %v595 = vmax.f32 %v587, 0.0
      %596 = vst [vmem:[%s240] sm:$0xff] %v588
      %597 = vst [vmem:[%s240 + $0x8] sm:$0xff] %v589
      %598 = vst [vmem:[%s240 + $0x10] sm:$0xff] %v590
      %599 = vst [vmem:[%s240 + $0x18] sm:$0xff] %v591
      %600 = vst [vmem:[%s240 + $0x20] sm:$0xff] %v592
      %601 = vst [vmem:[%s240 + $0x28] sm:$0xff] %v593
      %602 = vst [vmem:[%s240 + $0x30] sm:$0xff] %v594
      %603 = vst [vmem:[%s240 + $0x38] sm:$0xff] %v595
      %s604 = smul.u32 2, %s19
      %p605 = scmp.lt.s32.totalorder %s20, 0
      %s606 = scalar_select %p605, %s20, 0
      %p607 = scmp.lt.s32.totalorder %s604, 3
      %s608 = scalar_select %p607, %s604, 3
      %s609 = smul.addr %s608, 4
      %s610 = smul.addr %s606, 16
      %s611 = sadd.s32 %s609, %s610
      %s612 = smul.addr %s611, 8
      %s613 = scalar_lea.vmem %s4, %s612
      // Predicated region
      $region37: #{upsamplerB_forward.3} parent=35 // pred_check
        %p614 = pneg %p138
      $region38: #{upsamplerB_forward.3} parent=35 // pred_check_branch
        %616 = sbr.rel (%p614) target = $region40
      $region39: #{upsamplerB_forward.3} parent=35 // pred_region
        %s617 = smul.u32 2, %s19
      $region40: #{upsamplerB_forward.3} parent=35 // pred_fallthru
        _
    $region36: #{upsamplerB_forward.3} parent=5 // pred_fallthru
      _
    %p618 = scmp.le.s32.totalorder 2, %s10
    // Predicated region
    $region41: #{upsamplerB_forward.3} parent=5 // pred_check
      %p619 = pneg %p618
    $region42: #{upsamplerB_forward.3} parent=5 // pred_check_branch
      %621 = sbr.rel (%p619) target = $region44
    $region43: #{upsamplerB_forward.3} parent=5 // pred_region
      %s622 = ssub.s32 %s10, 2
      // Predicated region
      $region45: #{upsamplerB_forward.3} parent=43 // pred_check
        %p623 = pneg %p144
      $region46: #{upsamplerB_forward.3} parent=43 // pred_check_branch
        %625 = sbr.rel (%p623) target = $region48
      $region47: #{upsamplerB_forward.3} parent=43 // pred_region
        %s626 = smul.u32 2, %s21
        %p627 = scmp.lt.s32.totalorder %s22, 0
        %s628 = scalar_select %p627, %s22, 0
        %p629 = scmp.lt.s32.totalorder %s626, 3
        %s630 = scalar_select %p629, %s626, 3
        %s631 = smul.addr %s630, 4
        %s632 = smul.addr %s628, 16
        %s633 = sadd.s32 %s631, %s632
        %s634 = smul.addr %s633, 8
        %s635 = scalar_lea.vmem %s4, %s634
      $region48: #{upsamplerB_forward.3} parent=43 // pred_fallthru
        _
    $region44: #{upsamplerB_forward.3} parent=5 // pred_fallthru
      _
  $region6: #{upsamplerB_forward.3} parent=0 // loop_footer
    %s14 = sadd.s32 1, %s10
  $region7: #{upsamplerB_forward.3} parent=0 // loop_footer_branch
    %9 = sbr.rel target = $region3
  $region8: #{upsamplerB_forward.3} parent=0 // loop_exit
    _

</llo_original>
